<compile_context>
chip_gen: v5e
topology: v5e:2x2
jax: 0.10.0
libtpu: 0.0.40
codegen_flags: <defaults>
</compile_context>

<pallas_src>
import functools

import jax
import jax.numpy as jnp
from jax import lax
from jax.experimental import pallas as pl
from jax.experimental.pallas import tpu as pltpu

BN_EPS = 1e-5

# MXU operand dtype. bf16 gives full MXU rate on v5e/v6e/v7x and halves slab
# VMEM / bandwidth; accumulation stays f32.  (Set to jnp.float32 to debug
# against the f32 reference at ~1e-4 tolerance.)
MATMUL_DTYPE = jnp.bfloat16

# Per-step tiles here are tiny; 32 MiB scoped VMEM is safe on every generation.
VMEM_LIMIT_BYTES = 32 * 1024 * 1024


# --------------------------------------------------------------------------
# in-kernel helpers
# --------------------------------------------------------------------------
def _edge_masks(W, HW):
    """Lane masks that kill horizontal wrap-around for the dx=0 / dx=2 taps."""
    xpos = lax.broadcasted_iota(jnp.int32, (1, HW), 1) % W
    return {0: xpos > 0, 1: None, 2: xpos < W - 1}


def _fill_im2col(a, slab_ref, col0, xmasks, *, H, W, C):
    """Write the 9-tap im2col of one image into slab columns [col0, col0+H*W).

    a:        (C, H*W) f32 channel-major activation (flattened spatial on lanes).
    slab_ref: (9*C, Nb*H*W) MATMUL_DTYPE scratch; tap k=(dy,dx) fills sublanes
              [k*C, (k+1)*C), matching the (3,3,Cin,Cout)->(Cout,9*Cin) weight fold.

    Vertical (dy) out-of-bounds reads land in the W+1 zero pad; horizontal (dx)
    wrap-around across row boundaries is zeroed by the two lane masks.
    """
    HW = H * W
    PAD = W + 1
    zpad = jnp.zeros((C, PAD), a.dtype)
    ap = jnp.concatenate([zpad, a, zpad], axis=1)            # (C, HW + 2*PAD)
    for dy in range(3):
        for dx in range(3):
            k = dy * 3 + dx
            start = PAD + (dy - 1) * W + (dx - 1)            # static lane offset
            tap = ap[:, start:start + HW]                    # (C, HW)
            if xmasks[dx] is not None:
                tap = jnp.where(xmasks[dx], tap, 0.0)
            slab_ref[k * C:(k + 1) * C, col0:col0 + HW] = tap.astype(slab_ref.dtype)


# --------------------------------------------------------------------------
# kernels
# --------------------------------------------------------------------------
def _conv1_kernel(x_ref, w_ref, y_ref, st_ref, slab_ref, *, Nb, H, W, Cin, Cout):
    HW = H * W
    xmasks = _edge_masks(W, HW)
    for i in range(Nb):
        _fill_im2col(x_ref[i], slab_ref, i * HW, xmasks, H=H, W=W, C=Cin)
    # One MXU matmul: (Cout, 9*Cin) @ (9*Cin, Nb*H*W), f32 accumulation.
    y = jnp.dot(w_ref[...], slab_ref[...], preferred_element_type=jnp.float32)
    # Fused BN1 partial stats: full-width lane reductions -> (Cout, 1).
    s = jnp.sum(y, axis=1, keepdims=True)
    ss = jnp.sum(y * y, axis=1, keepdims=True)
    st_ref[0] = jnp.concatenate([s, ss], axis=1)             # (Cout, 2)
    for i in range(Nb):
        y_ref[i] = y[:, i * HW:(i + 1) * HW]                 # lane-dense store


def _conv2_kernel(y1_ref, s1_ref, t1_ref, w_ref, y2_ref, st_ref, slab_ref,
                  *, Nb, H, W, C):
    HW = H * W
    xmasks = _edge_masks(W, HW)
    scale = s1_ref[...]                                      # (C, 1), lane-broadcast
    shift = t1_ref[...]
    for i in range(Nb):
        # Fused BN1 + ReLU in the channel-major layout.
        a = jnp.maximum(y1_ref[i] * scale + shift, 0.0)      # (C, HW)
        _fill_im2col(a, slab_ref, i * HW, xmasks, H=H, W=W, C=C)
    y = jnp.dot(w_ref[...], slab_ref[...], preferred_element_type=jnp.float32)
    s = jnp.sum(y, axis=1, keepdims=True)
    ss = jnp.sum(y * y, axis=1, keepdims=True)
    st_ref[0] = jnp.concatenate([s, ss], axis=1)
    for i in range(Nb):
        y2_ref[i] = y[:, i * HW:(i + 1) * HW]


def _bn_relu_kernel(y_ref, s_ref, t_ref, o_ref):
    # Elementwise BN2 + ReLU epilogue; output is already NCHW (channel-major).
    s = s_ref[...][None]                                     # (1, C, 1)
    t = t_ref[...][None]
    o_ref[...] = jnp.maximum(y_ref[...] * s + t, 0.0)


# --------------------------------------------------------------------------
# wrapper
# --------------------------------------------------------------------------
def _bn_scale_shift(stats, gamma, beta, count):
    """stats: (steps, C, 2) per-grid-step [sum, sum_sq]. O(C) finalize."""
    total = jnp.sum(stats, axis=0)                           # (C, 2)
    mean = total[:, 0] / count
    var = jnp.maximum(total[:, 1] / count - mean * mean, 0.0)  # biased (PyTorch fwd)
    scale = gamma * jax.lax.rsqrt(var + BN_EPS)
    shift = beta - mean * scale
    return scale.reshape(-1, 1), shift.reshape(-1, 1)        # (C, 1) each


def double_conv_forward(x_nchw, params, *, images_per_step=None):
    """x_nchw: (N, Cin, H, W) float32. Returns (N, Cout, H, W)."""
    N, Cin, H, W = x_nchw.shape
    HW = H * W
    Cout = params["w1"].shape[-1]
    count = N * HW

    if images_per_step is None:
        # Largest Nb <= 8 dividing N that keeps >= 2 grid steps (v7x megacore);
        # larger Nb amortizes the ~0.35 us/step overhead when N is large.
        images_per_step = 1
        for nb in range(min(8, N), 0, -1):
            if N % nb == 0 and (N // nb >= 2 or nb == N == 1):
                images_per_step = nb
                break
    Nb = images_per_step
    assert N % Nb == 0, (N, Nb)
    steps = N // Nb

    # Channel-major, lane-dense carry: (N, C, H*W) == flattened NCHW, no transpose.
    x = x_nchw.reshape(N, Cin, HW).astype(jnp.float32)
    # Fold HWIO (3,3,Ci,Co) -> (Co, 9*Ci); one-time cast to the MXU dtype.
    w1 = jnp.transpose(params["w1"].reshape(9 * Cin, Cout)).astype(MATMUL_DTYPE)
    w2 = jnp.transpose(params["w2"].reshape(9 * Cout, Cout)).astype(MATMUL_DTYPE)
    # params["b1"] / params["b2"] are intentionally unused: a pre-BatchNorm conv
    # bias is exactly cancelled by the BN mean subtraction (batch-stats BN).

    cparams = pltpu.CompilerParams(dimension_semantics=("parallel",),
                                   vmem_limit_bytes=VMEM_LIMIT_BYTES)

    # ---- stage 1: conv1 + per-step BN1 partial stats ------------------------
    y1, st1 = pl.pallas_call(
        functools.partial(_conv1_kernel, Nb=Nb, H=H, W=W, Cin=Cin, Cout=Cout),
        grid=(steps,),
        in_specs=[
            pl.BlockSpec((Nb, Cin, HW), lambda n: (n, 0, 0)),
            pl.BlockSpec((Cout, 9 * Cin), lambda n: (0, 0)),
        ],
        out_specs=(
            pl.BlockSpec((Nb, Cout, HW), lambda n: (n, 0, 0)),
            pl.BlockSpec((1, Cout, 2), lambda n: (n, 0, 0)),
        ),
        out_shape=(
            jax.ShapeDtypeStruct((N, Cout, HW), jnp.float32),
            jax.ShapeDtypeStruct((steps, Cout, 2), jnp.float32),
        ),
        scratch_shapes=[pltpu.VMEM((9 * Cin, Nb * HW), MATMUL_DTYPE)],
        compiler_params=cparams,
        cost_estimate=pl.CostEstimate(
            flops=2 * N * HW * 9 * Cin * Cout,
            transcendentals=0,
            bytes_accessed=4 * N * HW * (Cin + Cout)),
    )(x, w1)

    scale1, shift1 = _bn_scale_shift(st1, params["g1"], params["be1"], count)

    # ---- stage 2: BN1 + ReLU + conv2 + per-step BN2 partial stats -----------
    y2, st2 = pl.pallas_call(
        functools.partial(_conv2_kernel, Nb=Nb, H=H, W=W, C=Cout),
        grid=(steps,),
        in_specs=[
            pl.BlockSpec((Nb, Cout, HW), lambda n: (n, 0, 0)),
            pl.BlockSpec((Cout, 1), lambda n: (0, 0)),
            pl.BlockSpec((Cout, 1), lambda n: (0, 0)),
            pl.BlockSpec((Cout, 9 * Cout), lambda n: (0, 0)),
        ],
        out_specs=(
            pl.BlockSpec((Nb, Cout, HW), lambda n: (n, 0, 0)),
            pl.BlockSpec((1, Cout, 2), lambda n: (n, 0, 0)),
        ),
        out_shape=(
            jax.ShapeDtypeStruct((N, Cout, HW), jnp.float32),
            jax.ShapeDtypeStruct((steps, Cout, 2), jnp.float32),
        ),
        scratch_shapes=[pltpu.VMEM((9 * Cout, Nb * HW), MATMUL_DTYPE)],
        compiler_params=cparams,
        cost_estimate=pl.CostEstimate(
            flops=2 * N * HW * 9 * Cout * Cout + 3 * N * HW * Cout,
            transcendentals=0,
            bytes_accessed=4 * 2 * N * HW * Cout),
    )(y1, scale1, shift1, w2)

    scale2, shift2 = _bn_scale_shift(st2, params["g2"], params["be2"], count)

    # ---- stage 3: BN2 + ReLU epilogue (output already channel-major/NCHW) ---
    out = pl.pallas_call(
        _bn_relu_kernel,
        grid=(steps,),
        in_specs=[
            pl.BlockSpec((Nb, Cout, HW), lambda n: (n, 0, 0)),
            pl.BlockSpec((Cout, 1), lambda n: (0, 0)),
            pl.BlockSpec((Cout, 1), lambda n: (0, 0)),
        ],
        out_specs=pl.BlockSpec((Nb, Cout, HW), lambda n: (n, 0, 0)),
        out_shape=jax.ShapeDtypeStruct((N, Cout, HW), jnp.float32),
        compiler_params=cparams,
        cost_estimate=pl.CostEstimate(
            flops=3 * N * HW * Cout,
            transcendentals=0,
            bytes_accessed=4 * 2 * N * HW * Cout),
    )(y2, scale2, shift2)

    return out.reshape(N, Cout, H, W)       # free reshape, no transpose pass


# ---------------- pure-JAX reference (for correctness check) ----------------
def _ref_double_conv(x_nchw, params):
    x = jnp.transpose(x_nchw, (0, 2, 3, 1)).astype(jnp.float32)   # NHWC

    def conv(x, w, b):
        y = lax.conv_general_dilated(
            x, w, window_strides=(1, 1), padding="SAME",
            dimension_numbers=("NHWC", "HWIO", "NHWC"),
            precision=lax.Precision.HIGHEST)
        return y + b

    def bn_relu(y, g, be):
        mean = jnp.mean(y, axis=(0, 1, 2), keepdims=True)
        var = jnp.mean((y - mean) ** 2, axis=(0, 1, 2), keepdims=True)
        return jnp.maximum((y - mean) * lax.rsqrt(var + BN_EPS) * g + be, 0.0)

    y = bn_relu(conv(x, params["w1"], params["b1"]), params["g1"], params["be1"])
    y = bn_relu(conv(y, params["w2"], params["b2"]), params["g2"], params["be2"])
    return jnp.transpose(y, (0, 3, 1, 2))


if __name__ == "__main__":
    N, Cin, Cout, H, W = 2, 4, 8, 16, 16

    key = jax.random.PRNGKey(0)
    kx, k1, k2, k3, k4 = jax.random.split(key, 5)

    x = jax.random.normal(kx, (N, Cin, H, W), dtype=jnp.float32)

    params = {
        # conv weights stored HWIO (3,3,in,out); biases per output channel
        "w1": jax.random.normal(k1, (3, 3, Cin, Cout), dtype=jnp.float32) * 0.1,
        "b1": jax.random.normal(k2, (Cout,), dtype=jnp.float32) * 0.1,
        "w2": jax.random.normal(k3, (3, 3, Cout, Cout), dtype=jnp.float32) * 0.1,
        "b2": jax.random.normal(k4, (Cout,), dtype=jnp.float32) * 0.1,
        # BatchNorm2d default affine init: gamma=1, beta=0
        "g1": jnp.ones((Cout,), jnp.float32),
        "be1": jnp.zeros((Cout,), jnp.float32),
        "g2": jnp.ones((Cout,), jnp.float32),
        "be2": jnp.zeros((Cout,), jnp.float32),
    }

    fwd = jax.jit(double_conv_forward)
    out = jax.block_until_ready(fwd(x, params))
    ref = jax.block_until_ready(_ref_double_conv(x, params))

    assert out.shape == (N, Cout, H, W), out.shape
    # bf16 MXU operands (f32 accumulation) vs. an f32 XLA reference: tolerance
    # loosened accordingly.
    max_err = float(jnp.max(jnp.abs(out - ref)))
    assert jnp.allclose(out, ref, rtol=5e-2, atol=5e-2), max_err

    print("KERNEL_OK")
</pallas_src>

<mosaic_0001>
module attributes {stable_mosaic.version = 11 : i64} {
  func.func @_conv1_kernel(%arg0: i32, %arg1: memref<1x4x256xf32, #tpu.memory_space<vmem>>, %arg2: memref<8x36xbf16, #tpu.memory_space<vmem>>, %arg3: memref<1x8x256xf32, #tpu.memory_space<vmem>>, %arg4: memref<1x8x2xf32, #tpu.memory_space<vmem>>, %arg5: memref<36x256xbf16, #tpu.memory_space<vmem>>) attributes {dimension_semantics = [#tpu.dimension_semantics<parallel>], iteration_bounds = array<i64: 2>, scalar_prefetch = 0 : i64, scratch_operands = 1 : i64, tpu.core_type = #tpu.core_type<tc>, window_params = [{transform_indices = @transform_0, window_bounds = array<i64: 1, 4, 256>}, {pipeline_mode = #tpu.pipeline_mode<synchronous>, transform_indices = @transform_1, window_bounds = array<i64: 8, 36>}, {transform_indices = @transform_2, window_bounds = array<i64: 1, 8, 256>}, {transform_indices = @transform_3, window_bounds = array<i64: 1, 8, 2>}]} {
    %0 = tpu.iota {dimensions = array<i32: 1>} : vector<1x256xi32>
    %c16_i32 = arith.constant 16 : i32
    %c0_i32 = arith.constant 0 : i32
    %1 = arith.cmpi eq, %c16_i32, %c0_i32 : i32
    %c1_i32 = arith.constant 1 : i32
    %2 = arith.select %1, %c1_i32, %c16_i32 : i32
    %3 = vector.broadcast %2 : i32 to vector<1x256xi32>
    %4 = arith.remsi %0, %3 : vector<1x256xi32>
    %c0_i32_0 = arith.constant 0 : i32
    %5 = vector.broadcast %c0_i32_0 : i32 to vector<1x256xi32>
    %6 = arith.cmpi ne, %4, %5 : vector<1x256xi32>
    %c0_i32_1 = arith.constant 0 : i32
    %7 = vector.broadcast %c0_i32_1 : i32 to vector<1x256xi32>
    %8 = arith.cmpi slt, %4, %7 : vector<1x256xi32>
    %c0_i32_2 = arith.constant 0 : i32
    %9 = arith.cmpi slt, %2, %c0_i32_2 : i32
    %10 = vector.broadcast %9 : i1 to vector<1x256xi1>
    %11 = vector.broadcast %10 : vector<1x256xi1> to vector<1x256xi1>
    %12 = arith.xori %8, %11 : vector<1x256xi1>
    %13 = arith.andi %12, %6 : vector<1x256xi1>
    %14 = vector.broadcast %2 : i32 to vector<1x256xi32>
    %15 = arith.addi %4, %14 : vector<1x256xi32>
    %16 = arith.select %13, %15, %4 : vector<1x256xi1>, vector<1x256xi32>
    %c0_i32_3 = arith.constant 0 : i32
    %17 = vector.broadcast %c0_i32_3 : i32 to vector<1x256xi32>
    %18 = arith.cmpi sgt, %16, %17 : vector<1x256xi32>
    %c15_i32 = arith.constant 15 : i32
    %19 = vector.broadcast %c15_i32 : i32 to vector<1x256xi32>
    %20 = arith.cmpi slt, %16, %19 : vector<1x256xi32>
    %c0 = arith.constant 0 : index
    %c0_4 = arith.constant 0 : index
    %c0_5 = arith.constant 0 : index
    %21 = vector.load %arg1[%c0, %c0_4, %c0_5] : memref<1x4x256xf32, #tpu.memory_space<vmem>>, vector<1x4x256xf32>
    %22 = vector.shape_cast %21 : vector<1x4x256xf32> to vector<4x256xf32>
    %cst = arith.constant 0.000000e+00 : f32
    %23 = vector.broadcast %cst : f32 to vector<4x17xf32>
    %24 = tpu.concatenate %23, %22, %23 in 1 : vector<4x17xf32>, vector<4x256xf32>, vector<4x17xf32> -> vector<4x290xf32>
    %25 = vector.extract_strided_slice %24 {offsets = [0, 0], sizes = [4, 256], strides = [1, 1]} : vector<4x290xf32> to vector<4x256xf32>
    %cst_6 = arith.constant 0.000000e+00 : f32
    %26 = vector.shape_cast %18 : vector<1x256xi1> to vector<1x256xi1>
    %27 = vector.broadcast %26 : vector<1x256xi1> to vector<4x256xi1>
    %28 = vector.broadcast %cst_6 : f32 to vector<4x256xf32>
    %29 = arith.select %27, %25, %28 : vector<4x256xi1>, vector<4x256xf32>
    %30 = arith.truncf %29 : vector<4x256xf32> to vector<4x256xbf16>
    %c0_7 = arith.constant 0 : index
    %c0_8 = arith.constant 0 : index
    %31 = vector.load %arg5[%c0_7, %c0_8] : memref<36x256xbf16, #tpu.memory_space<vmem>>, vector<4x256xbf16>
    tpu.vector_store %arg5[%c0_7, %c0_8], %30 {strides = array<i32>} : memref<36x256xbf16, #tpu.memory_space<vmem>>, vector<4x256xbf16>,
    %32 = vector.extract_strided_slice %24 {offsets = [0, 1], sizes = [4, 256], strides = [1, 1]} : vector<4x290xf32> to vector<4x256xf32>
    %33 = arith.truncf %32 : vector<4x256xf32> to vector<4x256xbf16>
    %c4 = arith.constant 4 : index
    %c0_9 = arith.constant 0 : index
    %34 = vector.load %arg5[%c4, %c0_9] : memref<36x256xbf16, #tpu.memory_space<vmem>>, vector<4x256xbf16>
    tpu.vector_store %arg5[%c4, %c0_9], %33 {strides = array<i32>} : memref<36x256xbf16, #tpu.memory_space<vmem>>, vector<4x256xbf16>,
    %35 = vector.extract_strided_slice %24 {offsets = [0, 2], sizes = [4, 256], strides = [1, 1]} : vector<4x290xf32> to vector<4x256xf32>
    %cst_10 = arith.constant 0.000000e+00 : f32
    %36 = vector.shape_cast %20 : vector<1x256xi1> to vector<1x256xi1>
    %37 = vector.broadcast %36 : vector<1x256xi1> to vector<4x256xi1>
    %38 = vector.broadcast %cst_10 : f32 to vector<4x256xf32>
    %39 = arith.select %37, %35, %38 : vector<4x256xi1>, vector<4x256xf32>
    %40 = arith.truncf %39 : vector<4x256xf32> to vector<4x256xbf16>
    %c8 = arith.constant 8 : index
    %c0_11 = arith.constant 0 : index
    %41 = vector.load %arg5[%c8, %c0_11] : memref<36x256xbf16, #tpu.memory_space<vmem>>, vector<4x256xbf16>
    tpu.vector_store %arg5[%c8, %c0_11], %40 {strides = array<i32>} : memref<36x256xbf16, #tpu.memory_space<vmem>>, vector<4x256xbf16>,
    %42 = vector.extract_strided_slice %24 {offsets = [0, 16], sizes = [4, 256], strides = [1, 1]} : vector<4x290xf32> to vector<4x256xf32>
    %cst_12 = arith.constant 0.000000e+00 : f32
    %43 = vector.shape_cast %18 : vector<1x256xi1> to vector<1x256xi1>
    %44 = vector.broadcast %43 : vector<1x256xi1> to vector<4x256xi1>
    %45 = vector.broadcast %cst_12 : f32 to vector<4x256xf32>
    %46 = arith.select %44, %42, %45 : vector<4x256xi1>, vector<4x256xf32>
    %47 = arith.truncf %46 : vector<4x256xf32> to vector<4x256xbf16>
    %c12 = arith.constant 12 : index
    %c0_13 = arith.constant 0 : index
    %48 = vector.load %arg5[%c12, %c0_13] : memref<36x256xbf16, #tpu.memory_space<vmem>>, vector<4x256xbf16>
    tpu.vector_store %arg5[%c12, %c0_13], %47 {strides = array<i32>} : memref<36x256xbf16, #tpu.memory_space<vmem>>, vector<4x256xbf16>,
    %49 = vector.extract_strided_slice %24 {offsets = [0, 17], sizes = [4, 256], strides = [1, 1]} : vector<4x290xf32> to vector<4x256xf32>
    %50 = arith.truncf %49 : vector<4x256xf32> to vector<4x256xbf16>
    %c16 = arith.constant 16 : index
    %c0_14 = arith.constant 0 : index
    %51 = vector.load %arg5[%c16, %c0_14] : memref<36x256xbf16, #tpu.memory_space<vmem>>, vector<4x256xbf16>
    tpu.vector_store %arg5[%c16, %c0_14], %50 {strides = array<i32>} : memref<36x256xbf16, #tpu.memory_space<vmem>>, vector<4x256xbf16>,
    %52 = vector.extract_strided_slice %24 {offsets = [0, 18], sizes = [4, 256], strides = [1, 1]} : vector<4x290xf32> to vector<4x256xf32>
    %cst_15 = arith.constant 0.000000e+00 : f32
    %53 = vector.shape_cast %20 : vector<1x256xi1> to vector<1x256xi1>
    %54 = vector.broadcast %53 : vector<1x256xi1> to vector<4x256xi1>
    %55 = vector.broadcast %cst_15 : f32 to vector<4x256xf32>
    %56 = arith.select %54, %52, %55 : vector<4x256xi1>, vector<4x256xf32>
    %57 = arith.truncf %56 : vector<4x256xf32> to vector<4x256xbf16>
    %c20 = arith.constant 20 : index
    %c0_16 = arith.constant 0 : index
    %58 = vector.load %arg5[%c20, %c0_16] : memref<36x256xbf16, #tpu.memory_space<vmem>>, vector<4x256xbf16>
    tpu.vector_store %arg5[%c20, %c0_16], %57 {strides = array<i32>} : memref<36x256xbf16, #tpu.memory_space<vmem>>, vector<4x256xbf16>,
    %59 = vector.extract_strided_slice %24 {offsets = [0, 32], sizes = [4, 256], strides = [1, 1]} : vector<4x290xf32> to vector<4x256xf32>
    %cst_17 = arith.constant 0.000000e+00 : f32
    %60 = vector.shape_cast %18 : vector<1x256xi1> to vector<1x256xi1>
    %61 = vector.broadcast %60 : vector<1x256xi1> to vector<4x256xi1>
    %62 = vector.broadcast %cst_17 : f32 to vector<4x256xf32>
    %63 = arith.select %61, %59, %62 : vector<4x256xi1>, vector<4x256xf32>
    %64 = arith.truncf %63 : vector<4x256xf32> to vector<4x256xbf16>
    %c24 = arith.constant 24 : index
    %c0_18 = arith.constant 0 : index
    %65 = vector.load %arg5[%c24, %c0_18] : memref<36x256xbf16, #tpu.memory_space<vmem>>, vector<4x256xbf16>
    tpu.vector_store %arg5[%c24, %c0_18], %64 {strides = array<i32>} : memref<36x256xbf16, #tpu.memory_space<vmem>>, vector<4x256xbf16>,
    %66 = vector.extract_strided_slice %24 {offsets = [0, 33], sizes = [4, 256], strides = [1, 1]} : vector<4x290xf32> to vector<4x256xf32>
    %67 = arith.truncf %66 : vector<4x256xf32> to vector<4x256xbf16>
    %c28 = arith.constant 28 : index
    %c0_19 = arith.constant 0 : index
    %68 = vector.load %arg5[%c28, %c0_19] : memref<36x256xbf16, #tpu.memory_space<vmem>>, vector<4x256xbf16>
    tpu.vector_store %arg5[%c28, %c0_19], %67 {strides = array<i32>} : memref<36x256xbf16, #tpu.memory_space<vmem>>, vector<4x256xbf16>,
    %69 = vector.extract_strided_slice %24 {offsets = [0, 34], sizes = [4, 256], strides = [1, 1]} : vector<4x290xf32> to vector<4x256xf32>
    %cst_20 = arith.constant 0.000000e+00 : f32
    %70 = vector.shape_cast %20 : vector<1x256xi1> to vector<1x256xi1>
    %71 = vector.broadcast %70 : vector<1x256xi1> to vector<4x256xi1>
    %72 = vector.broadcast %cst_20 : f32 to vector<4x256xf32>
    %73 = arith.select %71, %69, %72 : vector<4x256xi1>, vector<4x256xf32>
    %74 = arith.truncf %73 : vector<4x256xf32> to vector<4x256xbf16>
    %c32 = arith.constant 32 : index
    %c0_21 = arith.constant 0 : index
    %75 = vector.load %arg5[%c32, %c0_21] : memref<36x256xbf16, #tpu.memory_space<vmem>>, vector<4x256xbf16>
    tpu.vector_store %arg5[%c32, %c0_21], %74 {strides = array<i32>} : memref<36x256xbf16, #tpu.memory_space<vmem>>, vector<4x256xbf16>,
    %c0_22 = arith.constant 0 : index
    %c0_23 = arith.constant 0 : index
    %76 = vector.load %arg2[%c0_22, %c0_23] : memref<8x36xbf16, #tpu.memory_space<vmem>>, vector<8x36xbf16>
    %c0_24 = arith.constant 0 : index
    %c0_25 = arith.constant 0 : index
    %77 = vector.load %arg5[%c0_24, %c0_25] : memref<36x256xbf16, #tpu.memory_space<vmem>>, vector<36x256xbf16>
    %cst_26 = arith.constant dense<0.000000e+00> : vector<8x256xf32>
    %78 = tpu.matmul %76, %77, %cst_26 {dimension_numbers = #tpu.dot_dimension_numbers<[1], [0], [0], [1], [0, 0, 1, 1], [], []>} : vector<8x36xbf16>, vector<36x256xbf16>, vector<8x256xf32> -> vector<8x256xf32>
    %cst_27 = arith.constant dense<0.000000e+00> : vector<8xf32>
    %79 = vector.multi_reduction <add>, %78, %cst_27 [1] : vector<8x256xf32> to vector<8xf32>
    %80 = vector.shape_cast %79 : vector<8xf32> to vector<8x1xf32>
    %81 = arith.mulf %78, %78 : vector<8x256xf32>
    %cst_28 = arith.constant dense<0.000000e+00> : vector<8xf32>
    %82 = vector.multi_reduction <add>, %81, %cst_28 [1] : vector<8x256xf32> to vector<8xf32>
    %83 = vector.shape_cast %82 : vector<8xf32> to vector<8x1xf32>
    %84 = tpu.concatenate %80, %83 in 1 : vector<8x1xf32>, vector<8x1xf32> -> vector<8x2xf32>
    %c0_29 = arith.constant 0 : index
    %c0_30 = arith.constant 0 : index
    %c0_31 = arith.constant 0 : index
    %85 = vector.load %arg4[%c0_29, %c0_30, %c0_31] : memref<1x8x2xf32, #tpu.memory_space<vmem>>, vector<1x8x2xf32>
    %86 = vector.shape_cast %85 : vector<1x8x2xf32> to vector<8x2xf32>
    %87 = vector.shape_cast %84 : vector<8x2xf32> to vector<1x8x2xf32>
    tpu.vector_store %arg4[%c0_29, %c0_30, %c0_31], %87 {strides = array<i32>} : memref<1x8x2xf32, #tpu.memory_space<vmem>>, vector<1x8x2xf32>,
    %c0_32 = arith.constant 0 : index
    %c0_33 = arith.constant 0 : index
    %c0_34 = arith.constant 0 : index
    %88 = vector.load %arg3[%c0_32, %c0_33, %c0_34] : memref<1x8x256xf32, #tpu.memory_space<vmem>>, vector<1x8x256xf32>
    %89 = vector.shape_cast %88 : vector<1x8x256xf32> to vector<8x256xf32>
    %90 = vector.shape_cast %78 : vector<8x256xf32> to vector<1x8x256xf32>
    tpu.vector_store %arg3[%c0_32, %c0_33, %c0_34], %90 {strides = array<i32>} : memref<1x8x256xf32, #tpu.memory_space<vmem>>, vector<1x8x256xf32>,
    return
  }
  func.func @transform_0(%arg0: i32) -> (i32, i32, i32) {
    %c0_i32 = arith.constant 0 : i32
    %c0_i32_0 = arith.constant 0 : i32
    %c0_i32_1 = arith.constant 0 : i32
    return %arg0, %c0_i32, %c0_i32_0 : i32, i32, i32
  }
  func.func @transform_1(%arg0: i32) -> (i32, i32) {
    %c0_i32 = arith.constant 0 : i32
    %c0_i32_0 = arith.constant 0 : i32
    %c0_i32_1 = arith.constant 0 : i32
    return %c0_i32, %c0_i32_0 : i32, i32
  }
  func.func @transform_2(%arg0: i32) -> (i32, i32, i32) {
    %c0_i32 = arith.constant 0 : i32
    %c0_i32_0 = arith.constant 0 : i32
    %c0_i32_1 = arith.constant 0 : i32
    return %arg0, %c0_i32, %c0_i32_0 : i32, i32, i32
  }
  func.func @transform_3(%arg0: i32) -> (i32, i32, i32) {
    %c0_i32 = arith.constant 0 : i32
    %c0_i32_0 = arith.constant 0 : i32
    %c0_i32_1 = arith.constant 0 : i32
    return %arg0, %c0_i32, %c0_i32_0 : i32, i32, i32
  }
}

module attributes {stable_mosaic.version = 11 : i64} {
  func.func @_conv2_kernel(%arg0: i32, %arg1: memref<1x8x256xf32, #tpu.memory_space<vmem>>, %arg2: memref<8x1xf32, #tpu.memory_space<vmem>>, %arg3: memref<8x1xf32, #tpu.memory_space<vmem>>, %arg4: memref<8x72xbf16, #tpu.memory_space<vmem>>, %arg5: memref<1x8x256xf32, #tpu.memory_space<vmem>>, %arg6: memref<1x8x2xf32, #tpu.memory_space<vmem>>, %arg7: memref<72x256xbf16, #tpu.memory_space<vmem>>) attributes {dimension_semantics = [#tpu.dimension_semantics<parallel>], iteration_bounds = array<i64: 2>, scalar_prefetch = 0 : i64, scratch_operands = 1 : i64, tpu.core_type = #tpu.core_type<tc>, window_params = [{transform_indices = @transform_0, window_bounds = array<i64: 1, 8, 256>}, {pipeline_mode = #tpu.pipeline_mode<synchronous>, transform_indices = @transform_1, window_bounds = array<i64: 8, 1>}, {pipeline_mode = #tpu.pipeline_mode<synchronous>, transform_indices = @transform_2, window_bounds = array<i64: 8, 1>}, {pipeline_mode = #tpu.pipeline_mode<synchronous>, transform_indices = @transform_3, window_bounds = array<i64: 8, 72>}, {transform_indices = @transform_4, window_bounds = array<i64: 1, 8, 256>}, {transform_indices = @transform_5, window_bounds = array<i64: 1, 8, 2>}]} {
    %0 = tpu.iota {dimensions = array<i32: 1>} : vector<1x256xi32>
    %c16_i32 = arith.constant 16 : i32
    %c0_i32 = arith.constant 0 : i32
    %1 = arith.cmpi eq, %c16_i32, %c0_i32 : i32
    %c1_i32 = arith.constant 1 : i32
    %2 = arith.select %1, %c1_i32, %c16_i32 : i32
    %3 = vector.broadcast %2 : i32 to vector<1x256xi32>
    %4 = arith.remsi %0, %3 : vector<1x256xi32>
    %c0_i32_0 = arith.constant 0 : i32
    %5 = vector.broadcast %c0_i32_0 : i32 to vector<1x256xi32>
    %6 = arith.cmpi ne, %4, %5 : vector<1x256xi32>
    %c0_i32_1 = arith.constant 0 : i32
    %7 = vector.broadcast %c0_i32_1 : i32 to vector<1x256xi32>
    %8 = arith.cmpi slt, %4, %7 : vector<1x256xi32>
    %c0_i32_2 = arith.constant 0 : i32
    %9 = arith.cmpi slt, %2, %c0_i32_2 : i32
    %10 = vector.broadcast %9 : i1 to vector<1x256xi1>
    %11 = vector.broadcast %10 : vector<1x256xi1> to vector<1x256xi1>
    %12 = arith.xori %8, %11 : vector<1x256xi1>
    %13 = arith.andi %12, %6 : vector<1x256xi1>
    %14 = vector.broadcast %2 : i32 to vector<1x256xi32>
    %15 = arith.addi %4, %14 : vector<1x256xi32>
    %16 = arith.select %13, %15, %4 : vector<1x256xi1>, vector<1x256xi32>
    %c0_i32_3 = arith.constant 0 : i32
    %17 = vector.broadcast %c0_i32_3 : i32 to vector<1x256xi32>
    %18 = arith.cmpi sgt, %16, %17 : vector<1x256xi32>
    %c15_i32 = arith.constant 15 : i32
    %19 = vector.broadcast %c15_i32 : i32 to vector<1x256xi32>
    %20 = arith.cmpi slt, %16, %19 : vector<1x256xi32>
    %c0 = arith.constant 0 : index
    %c0_4 = arith.constant 0 : index
    %21 = vector.load %arg2[%c0, %c0_4] : memref<8x1xf32, #tpu.memory_space<vmem>>, vector<8x1xf32>
    %c0_5 = arith.constant 0 : index
    %c0_6 = arith.constant 0 : index
    %22 = vector.load %arg3[%c0_5, %c0_6] : memref<8x1xf32, #tpu.memory_space<vmem>>, vector<8x1xf32>
    %c0_7 = arith.constant 0 : index
    %c0_8 = arith.constant 0 : index
    %c0_9 = arith.constant 0 : index
    %23 = vector.load %arg1[%c0_7, %c0_8, %c0_9] : memref<1x8x256xf32, #tpu.memory_space<vmem>>, vector<1x8x256xf32>
    %24 = vector.shape_cast %23 : vector<1x8x256xf32> to vector<8x256xf32>
    %25 = vector.broadcast %21 : vector<8x1xf32> to vector<8x256xf32>
    %26 = arith.mulf %24, %25 : vector<8x256xf32>
    %27 = vector.broadcast %22 : vector<8x1xf32> to vector<8x256xf32>
    %28 = arith.addf %26, %27 : vector<8x256xf32>
    %cst = arith.constant 0.000000e+00 : f32
    %29 = vector.broadcast %cst : f32 to vector<8x256xf32>
    %30 = arith.maximumf %28, %29 : vector<8x256xf32>
    %cst_10 = arith.constant 0.000000e+00 : f32
    %31 = vector.broadcast %cst_10 : f32 to vector<8x17xf32>
    %32 = tpu.concatenate %31, %30, %31 in 1 : vector<8x17xf32>, vector<8x256xf32>, vector<8x17xf32> -> vector<8x290xf32>
    %33 = vector.extract_strided_slice %32 {offsets = [0, 0], sizes = [8, 256], strides = [1, 1]} : vector<8x290xf32> to vector<8x256xf32>
    %cst_11 = arith.constant 0.000000e+00 : f32
    %34 = vector.shape_cast %18 : vector<1x256xi1> to vector<1x256xi1>
    %35 = vector.broadcast %34 : vector<1x256xi1> to vector<8x256xi1>
    %36 = vector.broadcast %cst_11 : f32 to vector<8x256xf32>
    %37 = arith.select %35, %33, %36 : vector<8x256xi1>, vector<8x256xf32>
    %38 = arith.truncf %37 : vector<8x256xf32> to vector<8x256xbf16>
    %c0_12 = arith.constant 0 : index
    %c0_13 = arith.constant 0 : index
    %39 = vector.load %arg7[%c0_12, %c0_13] : memref<72x256xbf16, #tpu.memory_space<vmem>>, vector<8x256xbf16>
    tpu.vector_store %arg7[%c0_12, %c0_13], %38 {strides = array<i32>} : memref<72x256xbf16, #tpu.memory_space<vmem>>, vector<8x256xbf16>,
    %40 = vector.extract_strided_slice %32 {offsets = [0, 1], sizes = [8, 256], strides = [1, 1]} : vector<8x290xf32> to vector<8x256xf32>
    %41 = arith.truncf %40 : vector<8x256xf32> to vector<8x256xbf16>
    %c8 = arith.constant 8 : index
    %c0_14 = arith.constant 0 : index
    %42 = vector.load %arg7[%c8, %c0_14] : memref<72x256xbf16, #tpu.memory_space<vmem>>, vector<8x256xbf16>
    tpu.vector_store %arg7[%c8, %c0_14], %41 {strides = array<i32>} : memref<72x256xbf16, #tpu.memory_space<vmem>>, vector<8x256xbf16>,
    %43 = vector.extract_strided_slice %32 {offsets = [0, 2], sizes = [8, 256], strides = [1, 1]} : vector<8x290xf32> to vector<8x256xf32>
    %cst_15 = arith.constant 0.000000e+00 : f32
    %44 = vector.shape_cast %20 : vector<1x256xi1> to vector<1x256xi1>
    %45 = vector.broadcast %44 : vector<1x256xi1> to vector<8x256xi1>
    %46 = vector.broadcast %cst_15 : f32 to vector<8x256xf32>
    %47 = arith.select %45, %43, %46 : vector<8x256xi1>, vector<8x256xf32>
    %48 = arith.truncf %47 : vector<8x256xf32> to vector<8x256xbf16>
    %c16 = arith.constant 16 : index
    %c0_16 = arith.constant 0 : index
    %49 = vector.load %arg7[%c16, %c0_16] : memref<72x256xbf16, #tpu.memory_space<vmem>>, vector<8x256xbf16>
    tpu.vector_store %arg7[%c16, %c0_16], %48 {strides = array<i32>} : memref<72x256xbf16, #tpu.memory_space<vmem>>, vector<8x256xbf16>,
    %50 = vector.extract_strided_slice %32 {offsets = [0, 16], sizes = [8, 256], strides = [1, 1]} : vector<8x290xf32> to vector<8x256xf32>
    %cst_17 = arith.constant 0.000000e+00 : f32
    %51 = vector.shape_cast %18 : vector<1x256xi1> to vector<1x256xi1>
    %52 = vector.broadcast %51 : vector<1x256xi1> to vector<8x256xi1>
    %53 = vector.broadcast %cst_17 : f32 to vector<8x256xf32>
    %54 = arith.select %52, %50, %53 : vector<8x256xi1>, vector<8x256xf32>
    %55 = arith.truncf %54 : vector<8x256xf32> to vector<8x256xbf16>
    %c24 = arith.constant 24 : index
    %c0_18 = arith.constant 0 : index
    %56 = vector.load %arg7[%c24, %c0_18] : memref<72x256xbf16, #tpu.memory_space<vmem>>, vector<8x256xbf16>
    tpu.vector_store %arg7[%c24, %c0_18], %55 {strides = array<i32>} : memref<72x256xbf16, #tpu.memory_space<vmem>>, vector<8x256xbf16>,
    %57 = vector.extract_strided_slice %32 {offsets = [0, 17], sizes = [8, 256], strides = [1, 1]} : vector<8x290xf32> to vector<8x256xf32>
    %58 = arith.truncf %57 : vector<8x256xf32> to vector<8x256xbf16>
    %c32 = arith.constant 32 : index
    %c0_19 = arith.constant 0 : index
    %59 = vector.load %arg7[%c32, %c0_19] : memref<72x256xbf16, #tpu.memory_space<vmem>>, vector<8x256xbf16>
    tpu.vector_store %arg7[%c32, %c0_19], %58 {strides = array<i32>} : memref<72x256xbf16, #tpu.memory_space<vmem>>, vector<8x256xbf16>,
    %60 = vector.extract_strided_slice %32 {offsets = [0, 18], sizes = [8, 256], strides = [1, 1]} : vector<8x290xf32> to vector<8x256xf32>
    %cst_20 = arith.constant 0.000000e+00 : f32
    %61 = vector.shape_cast %20 : vector<1x256xi1> to vector<1x256xi1>
    %62 = vector.broadcast %61 : vector<1x256xi1> to vector<8x256xi1>
    %63 = vector.broadcast %cst_20 : f32 to vector<8x256xf32>
    %64 = arith.select %62, %60, %63 : vector<8x256xi1>, vector<8x256xf32>
    %65 = arith.truncf %64 : vector<8x256xf32> to vector<8x256xbf16>
    %c40 = arith.constant 40 : index
    %c0_21 = arith.constant 0 : index
    %66 = vector.load %arg7[%c40, %c0_21] : memref<72x256xbf16, #tpu.memory_space<vmem>>, vector<8x256xbf16>
    tpu.vector_store %arg7[%c40, %c0_21], %65 {strides = array<i32>} : memref<72x256xbf16, #tpu.memory_space<vmem>>, vector<8x256xbf16>,
    %67 = vector.extract_strided_slice %32 {offsets = [0, 32], sizes = [8, 256], strides = [1, 1]} : vector<8x290xf32> to vector<8x256xf32>
    %cst_22 = arith.constant 0.000000e+00 : f32
    %68 = vector.shape_cast %18 : vector<1x256xi1> to vector<1x256xi1>
    %69 = vector.broadcast %68 : vector<1x256xi1> to vector<8x256xi1>
    %70 = vector.broadcast %cst_22 : f32 to vector<8x256xf32>
    %71 = arith.select %69, %67, %70 : vector<8x256xi1>, vector<8x256xf32>
    %72 = arith.truncf %71 : vector<8x256xf32> to vector<8x256xbf16>
    %c48 = arith.constant 48 : index
    %c0_23 = arith.constant 0 : index
    %73 = vector.load %arg7[%c48, %c0_23] : memref<72x256xbf16, #tpu.memory_space<vmem>>, vector<8x256xbf16>
    tpu.vector_store %arg7[%c48, %c0_23], %72 {strides = array<i32>} : memref<72x256xbf16, #tpu.memory_space<vmem>>, vector<8x256xbf16>,
    %74 = vector.extract_strided_slice %32 {offsets = [0, 33], sizes = [8, 256], strides = [1, 1]} : vector<8x290xf32> to vector<8x256xf32>
    %75 = arith.truncf %74 : vector<8x256xf32> to vector<8x256xbf16>
    %c56 = arith.constant 56 : index
    %c0_24 = arith.constant 0 : index
    %76 = vector.load %arg7[%c56, %c0_24] : memref<72x256xbf16, #tpu.memory_space<vmem>>, vector<8x256xbf16>
    tpu.vector_store %arg7[%c56, %c0_24], %75 {strides = array<i32>} : memref<72x256xbf16, #tpu.memory_space<vmem>>, vector<8x256xbf16>,
    %77 = vector.extract_strided_slice %32 {offsets = [0, 34], sizes = [8, 256], strides = [1, 1]} : vector<8x290xf32> to vector<8x256xf32>
    %cst_25 = arith.constant 0.000000e+00 : f32
    %78 = vector.shape_cast %20 : vector<1x256xi1> to vector<1x256xi1>
    %79 = vector.broadcast %78 : vector<1x256xi1> to vector<8x256xi1>
    %80 = vector.broadcast %cst_25 : f32 to vector<8x256xf32>
    %81 = arith.select %79, %77, %80 : vector<8x256xi1>, vector<8x256xf32>
    %82 = arith.truncf %81 : vector<8x256xf32> to vector<8x256xbf16>
    %c64 = arith.constant 64 : index
    %c0_26 = arith.constant 0 : index
    %83 = vector.load %arg7[%c64, %c0_26] : memref<72x256xbf16, #tpu.memory_space<vmem>>, vector<8x256xbf16>
    tpu.vector_store %arg7[%c64, %c0_26], %82 {strides = array<i32>} : memref<72x256xbf16, #tpu.memory_space<vmem>>, vector<8x256xbf16>,
    %c0_27 = arith.constant 0 : index
    %c0_28 = arith.constant 0 : index
    %84 = vector.load %arg4[%c0_27, %c0_28] : memref<8x72xbf16, #tpu.memory_space<vmem>>, vector<8x72xbf16>
    %c0_29 = arith.constant 0 : index
    %c0_30 = arith.constant 0 : index
    %85 = vector.load %arg7[%c0_29, %c0_30] : memref<72x256xbf16, #tpu.memory_space<vmem>>, vector<72x256xbf16>
    %cst_31 = arith.constant dense<0.000000e+00> : vector<8x256xf32>
    %86 = tpu.matmul %84, %85, %cst_31 {dimension_numbers = #tpu.dot_dimension_numbers<[1], [0], [0], [1], [0, 0, 1, 1], [], []>} : vector<8x72xbf16>, vector<72x256xbf16>, vector<8x256xf32> -> vector<8x256xf32>
    %cst_32 = arith.constant dense<0.000000e+00> : vector<8xf32>
    %87 = vector.multi_reduction <add>, %86, %cst_32 [1] : vector<8x256xf32> to vector<8xf32>
    %88 = vector.shape_cast %87 : vector<8xf32> to vector<8x1xf32>
    %89 = arith.mulf %86, %86 : vector<8x256xf32>
    %cst_33 = arith.constant dense<0.000000e+00> : vector<8xf32>
    %90 = vector.multi_reduction <add>, %89, %cst_33 [1] : vector<8x256xf32> to vector<8xf32>
    %91 = vector.shape_cast %90 : vector<8xf32> to vector<8x1xf32>
    %92 = tpu.concatenate %88, %91 in 1 : vector<8x1xf32>, vector<8x1xf32> -> vector<8x2xf32>
    %c0_34 = arith.constant 0 : index
    %c0_35 = arith.constant 0 : index
    %c0_36 = arith.constant 0 : index
    %93 = vector.load %arg6[%c0_34, %c0_35, %c0_36] : memref<1x8x2xf32, #tpu.memory_space<vmem>>, vector<1x8x2xf32>
    %94 = vector.shape_cast %93 : vector<1x8x2xf32> to vector<8x2xf32>
    %95 = vector.shape_cast %92 : vector<8x2xf32> to vector<1x8x2xf32>
    tpu.vector_store %arg6[%c0_34, %c0_35, %c0_36], %95 {strides = array<i32>} : memref<1x8x2xf32, #tpu.memory_space<vmem>>, vector<1x8x2xf32>,
    %c0_37 = arith.constant 0 : index
    %c0_38 = arith.constant 0 : index
    %c0_39 = arith.constant 0 : index
    %96 = vector.load %arg5[%c0_37, %c0_38, %c0_39] : memref<1x8x256xf32, #tpu.memory_space<vmem>>, vector<1x8x256xf32>
    %97 = vector.shape_cast %96 : vector<1x8x256xf32> to vector<8x256xf32>
    %98 = vector.shape_cast %86 : vector<8x256xf32> to vector<1x8x256xf32>
    tpu.vector_store %arg5[%c0_37, %c0_38, %c0_39], %98 {strides = array<i32>} : memref<1x8x256xf32, #tpu.memory_space<vmem>>, vector<1x8x256xf32>,
    return
  }
  func.func @transform_0(%arg0: i32) -> (i32, i32, i32) {
    %c0_i32 = arith.constant 0 : i32
    %c0_i32_0 = arith.constant 0 : i32
    %c0_i32_1 = arith.constant 0 : i32
    return %arg0, %c0_i32, %c0_i32_0 : i32, i32, i32
  }
  func.func @transform_1(%arg0: i32) -> (i32, i32) {
    %c0_i32 = arith.constant 0 : i32
    %c0_i32_0 = arith.constant 0 : i32
    %c0_i32_1 = arith.constant 0 : i32
    return %c0_i32, %c0_i32_0 : i32, i32
  }
  func.func @transform_2(%arg0: i32) -> (i32, i32) {
    %c0_i32 = arith.constant 0 : i32
    %c0_i32_0 = arith.constant 0 : i32
    %c0_i32_1 = arith.constant 0 : i32
    return %c0_i32, %c0_i32_0 : i32, i32
  }
  func.func @transform_3(%arg0: i32) -> (i32, i32) {
    %c0_i32 = arith.constant 0 : i32
    %c0_i32_0 = arith.constant 0 : i32
    %c0_i32_1 = arith.constant 0 : i32
    return %c0_i32, %c0_i32_0 : i32, i32
  }
  func.func @transform_4(%arg0: i32) -> (i32, i32, i32) {
    %c0_i32 = arith.constant 0 : i32
    %c0_i32_0 = arith.constant 0 : i32
    %c0_i32_1 = arith.constant 0 : i32
    return %arg0, %c0_i32, %c0_i32_0 : i32, i32, i32
  }
  func.func @transform_5(%arg0: i32) -> (i32, i32, i32) {
    %c0_i32 = arith.constant 0 : i32
    %c0_i32_0 = arith.constant 0 : i32
    %c0_i32_1 = arith.constant 0 : i32
    return %arg0, %c0_i32, %c0_i32_0 : i32, i32, i32
  }
}

module attributes {stable_mosaic.version = 11 : i64} {
  func.func @_bn_relu_kernel(%arg0: i32, %arg1: memref<1x8x256xf32, #tpu.memory_space<vmem>>, %arg2: memref<8x1xf32, #tpu.memory_space<vmem>>, %arg3: memref<8x1xf32, #tpu.memory_space<vmem>>, %arg4: memref<1x8x256xf32, #tpu.memory_space<vmem>>) attributes {dimension_semantics = [#tpu.dimension_semantics<parallel>], iteration_bounds = array<i64: 2>, scalar_prefetch = 0 : i64, scratch_operands = 0 : i64, tpu.core_type = #tpu.core_type<tc>, window_params = [{transform_indices = @transform_0, window_bounds = array<i64: 1, 8, 256>}, {pipeline_mode = #tpu.pipeline_mode<synchronous>, transform_indices = @transform_1, window_bounds = array<i64: 8, 1>}, {pipeline_mode = #tpu.pipeline_mode<synchronous>, transform_indices = @transform_2, window_bounds = array<i64: 8, 1>}, {transform_indices = @transform_3, window_bounds = array<i64: 1, 8, 256>}]} {
    %c0 = arith.constant 0 : index
    %c0_0 = arith.constant 0 : index
    %0 = vector.load %arg2[%c0, %c0_0] : memref<8x1xf32, #tpu.memory_space<vmem>>, vector<8x1xf32>
    %1 = vector.shape_cast %0 : vector<8x1xf32> to vector<1x8x1xf32>
    %c0_1 = arith.constant 0 : index
    %c0_2 = arith.constant 0 : index
    %2 = vector.load %arg3[%c0_1, %c0_2] : memref<8x1xf32, #tpu.memory_space<vmem>>, vector<8x1xf32>
    %3 = vector.shape_cast %2 : vector<8x1xf32> to vector<1x8x1xf32>
    %c0_3 = arith.constant 0 : index
    %c0_4 = arith.constant 0 : index
    %c0_5 = arith.constant 0 : index
    %4 = vector.load %arg1[%c0_3, %c0_4, %c0_5] : memref<1x8x256xf32, #tpu.memory_space<vmem>>, vector<1x8x256xf32>
    %5 = vector.broadcast %1 : vector<1x8x1xf32> to vector<1x8x256xf32>
    %6 = arith.mulf %4, %5 : vector<1x8x256xf32>
    %7 = vector.broadcast %3 : vector<1x8x1xf32> to vector<1x8x256xf32>
    %8 = arith.addf %6, %7 : vector<1x8x256xf32>
    %cst = arith.constant 0.000000e+00 : f32
    %9 = vector.broadcast %cst : f32 to vector<1x8x256xf32>
    %10 = arith.maximumf %8, %9 : vector<1x8x256xf32>
    %c0_6 = arith.constant 0 : index
    %c0_7 = arith.constant 0 : index
    %c0_8 = arith.constant 0 : index
    %11 = vector.load %arg4[%c0_6, %c0_7, %c0_8] : memref<1x8x256xf32, #tpu.memory_space<vmem>>, vector<1x8x256xf32>
    tpu.vector_store %arg4[%c0_6, %c0_7, %c0_8], %10 {strides = array<i32>} : memref<1x8x256xf32, #tpu.memory_space<vmem>>, vector<1x8x256xf32>,
    return
  }
  func.func @transform_0(%arg0: i32) -> (i32, i32, i32) {
    %c0_i32 = arith.constant 0 : i32
    %c0_i32_0 = arith.constant 0 : i32
    %c0_i32_1 = arith.constant 0 : i32
    return %arg0, %c0_i32, %c0_i32_0 : i32, i32, i32
  }
  func.func @transform_1(%arg0: i32) -> (i32, i32) {
    %c0_i32 = arith.constant 0 : i32
    %c0_i32_0 = arith.constant 0 : i32
    %c0_i32_1 = arith.constant 0 : i32
    return %c0_i32, %c0_i32_0 : i32, i32
  }
  func.func @transform_2(%arg0: i32) -> (i32, i32) {
    %c0_i32 = arith.constant 0 : i32
    %c0_i32_0 = arith.constant 0 : i32
    %c0_i32_1 = arith.constant 0 : i32
    return %c0_i32, %c0_i32_0 : i32, i32
  }
  func.func @transform_3(%arg0: i32) -> (i32, i32, i32) {
    %c0_i32 = arith.constant 0 : i32
    %c0_i32_0 = arith.constant 0 : i32
    %c0_i32_1 = arith.constant 0 : i32
    return %arg0, %c0_i32, %c0_i32_0 : i32, i32, i32
  }
}

</mosaic_0001>

<llo_original>
// kernel: double_conv_forward.5
$region0: #{double_conv_forward.5}
  #allocation0 [shape = 'u32[]', space=smem, size = 0x4, offset = 0x4, fixed_abs, tag = 'smem constant byte address 0x4 - core index']
  #allocation1 [shape = 'u32[72,128]{1,0:T(1,128)}', space=vmem, size = 0x9000, scoped, tag = 'internal scratch']
  %s0 = inlined_call_operand.vmem [shape: f32[2,8,256], index: 0, kind: input, shape index: {}]
  %s1 = inlined_call_operand.vmem [shape: f32[8,1], index: 1, kind: input, shape index: {}]
  %s2 = inlined_call_operand.vmem [shape: f32[8,1], index: 2, kind: input, shape index: {}]
  %s3 = inlined_call_operand.vmem [shape: f32[2,8,256], index: 3, kind: output, shape index: {}]
  %s4 = sld [smem:[#allocation0]]
  $region45: #{double_conv_forward.5} parent=0
    _
  %s6 = ssub.s32 1, %s4
  %s7 = scalar_select 0, %s6, %s4
  loop: start=0, step=1, limit=4
  $region2: #{double_conv_forward.5} parent=0 // loop_pre_header
    _
  $region3: #{double_conv_forward.5} parent=0 // loop_header
    %s9 = sphi 0, %s13
    %p10 = scmp.ge.s32.totalorder %s9, 4
    %s19 = sphi 0, %s21
    %s22 = sphi 0, %s19
    %s23 = sphi 0, %s22
    %s39 = sphi 0, %s23
    %s43 = sphi 0, %s43
    %s45 = sphi 0, %s43
    %s46 = sphi 0, %s45
    %s60 = sphi 0, %s46
    %s64 = sphi 0, %s64
    %s66 = sphi 0, %s64
    %s67 = sphi 0, %s66
    %s81 = sphi 0, %s67
    %s87 = sphi 0, %s89
    %s90 = sphi 0, %s87
    %s91 = sphi 0, %s90
    %s107 = sphi 0, %s91
  $region4: #{double_conv_forward.5} parent=0 // loop_header_branch
    %12 = sbr.rel (%p10) target = $region8
  $region5: #{double_conv_forward.5} parent=0 // loop_body
    %s14 = ssub.s32 %s9, 1
    %s15 = ssub.s32 %s9, 2
    %s16 = sadd.s32 %s9, 1
    %s17 = ssub.s32 %s9, %s16
    %p18 = scmp.eq.s32.totalorder %s17, 0
    %s20 = sadd.s32 %s19, 1
    %s21 = scalar_select %p18, %s19, %s20
    %p24 = pneg %p18
    %p25 = scmp.eq.s32.totalorder %s9, 1
    %p26 = por %p24, %p25
    %p27 = scmp.ne.s32.totalorder %s19, %s22
    %p28 = scmp.eq.s32.totalorder %s9, 0
    %p29 = por %p27, %p28
    %p30 = scmp.ne.s32.totalorder %s19, %s22
    %p31 = scmp.eq.s32.totalorder %s14, 1
    %p32 = por %p30, %p31
    %p33 = scmp.ne.s32.totalorder %s22, %s23
    %p34 = scmp.eq.s32.totalorder %s14, 0
    %p35 = por %p33, %p34
    %p36 = scmp.ne.s32.totalorder %s22, %s23
    %p37 = scmp.eq.s32.totalorder %s15, 1
    %p38 = por %p36, %p37
    %p40 = scmp.ne.s32.totalorder %s23, %s39
    %p41 = scmp.eq.s32.totalorder %s15, 0
    %p42 = por %p40, %p41
    %s44 = sadd.s32 %s43, 1
    %p47 = scmp.eq.s32.totalorder %s9, 1
    %p48 = scmp.ne.s32.totalorder %s43, %s45
    %p49 = scmp.eq.s32.totalorder %s9, 0
    %p50 = por %p48, %p49
    %p51 = scmp.ne.s32.totalorder %s43, %s45
    %p52 = scmp.eq.s32.totalorder %s14, 1
    %p53 = por %p51, %p52
    %p54 = scmp.ne.s32.totalorder %s45, %s46
    %p55 = scmp.eq.s32.totalorder %s14, 0
    %p56 = por %p54, %p55
    %p57 = scmp.ne.s32.totalorder %s45, %s46
    %p58 = scmp.eq.s32.totalorder %s15, 1
    %p59 = por %p57, %p58
    %p61 = scmp.ne.s32.totalorder %s46, %s60
    %p62 = scmp.eq.s32.totalorder %s15, 0
    %p63 = por %p61, %p62
    %s65 = sadd.s32 %s64, 1
    %p68 = scmp.eq.s32.totalorder %s9, 1
    %p69 = scmp.ne.s32.totalorder %s64, %s66
    %p70 = scmp.eq.s32.totalorder %s9, 0
    %p71 = por %p69, %p70
    %p72 = scmp.ne.s32.totalorder %s64, %s66
    %p73 = scmp.eq.s32.totalorder %s14, 1
    %p74 = por %p72, %p73
    %p75 = scmp.ne.s32.totalorder %s66, %s67
    %p76 = scmp.eq.s32.totalorder %s14, 0
    %p77 = por %p75, %p76
    %p78 = scmp.ne.s32.totalorder %s66, %s67
    %p79 = scmp.eq.s32.totalorder %s15, 1
    %p80 = por %p78, %p79
    %p82 = scmp.ne.s32.totalorder %s67, %s81
    %p83 = scmp.eq.s32.totalorder %s15, 0
    %p84 = por %p82, %p83
    %s85 = ssub.s32 %s9, %s16
    %p86 = scmp.eq.s32.totalorder %s85, 0
    %s88 = sadd.s32 %s87, 1
    %s89 = scalar_select %p86, %s87, %s88
    %p92 = pneg %p86
    %p93 = scmp.eq.s32.totalorder %s9, 1
    %p94 = por %p92, %p93
    %p95 = scmp.ne.s32.totalorder %s87, %s90
    %p96 = scmp.eq.s32.totalorder %s9, 0
    %p97 = por %p95, %p96
    %p98 = scmp.ne.s32.totalorder %s87, %s90
    %p99 = scmp.eq.s32.totalorder %s14, 1
    %p100 = por %p98, %p99
    %p101 = scmp.ne.s32.totalorder %s90, %s91
    %p102 = scmp.eq.s32.totalorder %s14, 0
    %p103 = por %p101, %p102
    %p104 = scmp.ne.s32.totalorder %s90, %s91
    %p105 = scmp.eq.s32.totalorder %s15, 1
    %p106 = por %p104, %p105
    %p108 = scmp.ne.s32.totalorder %s91, %s107
    %p109 = scmp.eq.s32.totalorder %s15, 0
    %p110 = por %p108, %p109
    %p111 = scmp.le.s32.totalorder 1, %s9
    %p112 = scmp.lt.s32.totalorder %s9, 3
    %p113 = pnand %p111, %p112
    %p114 = pneg %p113
    // Predicated region
    $region9: #{double_conv_forward.5} parent=5 // pred_check
      _
    $region10: #{double_conv_forward.5} parent=5 // pred_check_branch
      %116 = sbr.rel (%p113) target = $region12
    $region11: #{double_conv_forward.5} parent=5 // pred_region
      %s117 = ssub.s32 %s9, 1
      // Predicated region
      $region13: #{double_conv_forward.5} parent=11 // pred_check
        %p118 = pneg %p56
      $region14: #{double_conv_forward.5} parent=11 // pred_check_branch
        %120 = sbr.rel (%p118) target = $region16
      $region15: #{double_conv_forward.5} parent=11 // pred_region
        _
      $region16: #{double_conv_forward.5} parent=11 // pred_fallthru
        _
      // Predicated region
      $region17: #{double_conv_forward.5} parent=11 // pred_check
        %p121 = pneg %p77
      $region18: #{double_conv_forward.5} parent=11 // pred_check_branch
        %123 = sbr.rel (%p121) target = $region20
      $region19: #{double_conv_forward.5} parent=11 // pred_region
        _
      $region20: #{double_conv_forward.5} parent=11 // pred_fallthru
        _
    $region12: #{double_conv_forward.5} parent=5 // pred_fallthru
      _
    %p124 = scmp.lt.s32.totalorder %s9, 2
    // Predicated region
    $region21: #{double_conv_forward.5} parent=5 // pred_check
      %p125 = pneg %p124
    $region22: #{double_conv_forward.5} parent=5 // pred_check_branch
      %127 = sbr.rel (%p125) target = $region24
    $region23: #{double_conv_forward.5} parent=5 // pred_region
      // Predicated region
      $region25: #{double_conv_forward.5} parent=23 // pred_check
        %p128 = pneg %p29
      $region26: #{double_conv_forward.5} parent=23 // pred_check_branch
        %130 = sbr.rel (%p128) target = $region28
      $region27: #{double_conv_forward.5} parent=23 // pred_region
        %p131 = scmp.lt.s32.totalorder %s9, 1
        %s132 = scalar_select %p131, %s9, 1
        %s133 = smul.addr %s132, 2
        %s134 = smul.addr %s133, 8
        %s135 = scalar_lea.vmem %s0, %s134
      $region28: #{double_conv_forward.5} parent=23 // pred_fallthru
        _
    $region24: #{double_conv_forward.5} parent=5 // pred_fallthru
      _
    %p136 = scmp.le.s32.totalorder 1, %s9
    %p137 = scmp.lt.s32.totalorder %s9, 3
    %p138 = pnand %p136, %p137
    %p139 = pneg %p138
    // Predicated region
    $region29: #{double_conv_forward.5} parent=5 // pred_check
      _
    $region30: #{double_conv_forward.5} parent=5 // pred_check_branch
      %141 = sbr.rel (%p138) target = $region32
    $region31: #{double_conv_forward.5} parent=5 // pred_region
      %s142 = ssub.s32 %s9, 1
      %p143 = scmp.lt.s32.totalorder %s14, 1
      %s144 = scalar_select %p143, %s14, 1
      %s145 = smul.addr %s144, 2
      %s146 = smul.addr %s145, 8
      %s147 = scalar_lea.vmem %s0, %s146
      %p148 = pneg %p35
      %p149 = pneg %p32
      %p150 = pneg %p56
      %p151 = pneg %p53
      %p152 = pneg %p77
      %p153 = pneg %p74
      %p154 = pneg %p103
      %p155 = pneg %p100
      %p156 = scmp.lt.s32.totalorder %s14, 1
      %s157 = scalar_select %p156, %s14, 1
      %s158 = smul.addr %s157, 2
      %s159 = smul.addr %s158, 8
      %s160 = scalar_lea.vmem %s3, %s159
      %p161 = scmp.lt.s32.totalorder %s14, 1
      %s162 = scalar_select %p161, %s14, 1
      %s163 = smul.addr %s162, 2
      %s164 = smul.addr %s163, 8
      %s165 = scalar_lea.vmem %s0, %s164
      %p166 = scmp.lt.s32.totalorder %s14, 1
      %s167 = scalar_select %p166, %s14, 1
      %s168 = smul.addr %s167, 2
      %s169 = smul.addr %s168, 8
      %s170 = scalar_lea.vmem %s3, %s169
      %v171 = vld [vmem:[%s1] sm:$0xff]
      %v172 = vld [vmem:[%s2] sm:$0xff]
      %v173 = vld [vmem:[%s165] sm:$0xff]
      %v174 = vld [vmem:[%s165 + $0x8] sm:$0xff]
      %176 = vset.pattern.permute.xlu0 0
      %177 = vperm.xlu0 %176, %v171
      %v178 = vpop.permute.xlu0 %177
      %v180 = vmul.f32 %v173, %v178
      %v181 = vmul.f32 %v174, %v178
      %183 = vset.pattern.permute.xlu0 0
      %184 = vperm.xlu0 %183, %v172
      %v185 = vpop.permute.xlu0 %184
      %v187 = vadd.f32 %v180, %v185
      %v188 = vadd.f32 %v181, %v185
      %v189 = vmax.f32 %v187, 0.0
      %v190 = vmax.f32 %v188, 0.0
      %191 = vst [vmem:[%s170] sm:$0xff] %v189
      %192 = vst [vmem:[%s170 + $0x8] sm:$0xff] %v190
      %p193 = scmp.lt.s32.totalorder %s14, 1
      %s194 = scalar_select %p193, %s14, 1
      %s195 = smul.addr %s194, 2
      %s196 = smul.addr %s195, 8
      %s197 = scalar_lea.vmem %s3, %s196
      // Predicated region
      $region33: #{double_conv_forward.5} parent=31 // pred_check
        %p198 = pneg %p100
      $region34: #{double_conv_forward.5} parent=31 // pred_check_branch
        %200 = sbr.rel (%p198) target = $region36
      $region35: #{double_conv_forward.5} parent=31 // pred_region
        _
      $region36: #{double_conv_forward.5} parent=31 // pred_fallthru
        _
    $region32: #{double_conv_forward.5} parent=5 // pred_fallthru
      _
    %p201 = scmp.le.s32.totalorder 2, %s9
    // Predicated region
    $region37: #{double_conv_forward.5} parent=5 // pred_check
      %p202 = pneg %p201
    $region38: #{double_conv_forward.5} parent=5 // pred_check_branch
      %204 = sbr.rel (%p202) target = $region40
    $region39: #{double_conv_forward.5} parent=5 // pred_region
      %s205 = ssub.s32 %s9, 2
      // Predicated region
      $region41: #{double_conv_forward.5} parent=39 // pred_check
        %p206 = pneg %p106
      $region42: #{double_conv_forward.5} parent=39 // pred_check_branch
        %208 = sbr.rel (%p206) target = $region44
      $region43: #{double_conv_forward.5} parent=39 // pred_region
        %p209 = scmp.lt.s32.totalorder %s15, 1
        %s210 = scalar_select %p209, %s15, 1
        %s211 = smul.addr %s210, 2
        %s212 = smul.addr %s211, 8
        %s213 = scalar_lea.vmem %s3, %s212
      $region44: #{double_conv_forward.5} parent=39 // pred_fallthru
        _
    $region40: #{double_conv_forward.5} parent=5 // pred_fallthru
      _
  $region6: #{double_conv_forward.5} parent=0 // loop_footer
    %s13 = sadd.s32 1, %s9
  $region7: #{double_conv_forward.5} parent=0 // loop_footer_branch
    %8 = sbr.rel target = $region3
  $region8: #{double_conv_forward.5} parent=0 // loop_exit
    _

// kernel: double_conv_forward.3
$region0: #{double_conv_forward.3}
  #allocation0 [shape = 'u32[]', space=smem, size = 0x4, offset = 0x4, fixed_abs, tag = 'smem constant byte address 0x4 - core index']
  #allocation1 [shape = 'u32[72,128]{1,0:T(1,128)}', space=vmem, size = 0x9000, scoped, tag = 'internal scratch']
  #allocation2 [shape = 'bf16[36,256]{1,0:T(8,128)(2,1)}', space=vmem, size = 0x5000, scoped, tag = 'scratch operand']
  %s0 = inlined_call_operand.vmem [shape: f32[2,4,256], index: 0, kind: input, shape index: {}]
  %s1 = inlined_call_operand.vmem [shape: bf16[8,36], index: 1, kind: input, shape index: {}]
  %s2 = inlined_call_operand.vmem [shape: f32[2,8,256], index: 2, kind: output, shape index: {0}]
  %s3 = inlined_call_operand.vmem [shape: f32[2,8,2], index: 3, kind: output, shape index: {1}]
  %4 = xla_tuple %s2, %s3
  %s5 = sld [smem:[#allocation0]]
  $region49: #{double_conv_forward.3} parent=0
    _
  %s7 = ssub.s32 1, %s5
  %s8 = scalar_select 0, %s7, %s5
  loop: start=0, step=1, limit=4
  $region2: #{double_conv_forward.3} parent=0 // loop_pre_header
    _
  $region3: #{double_conv_forward.3} parent=0 // loop_header
    %s10 = sphi 0, %s14
    %p11 = scmp.ge.s32.totalorder %s10, 4
    %s20 = sphi 0, %s22
    %s23 = sphi 0, %s20
    %s24 = sphi 0, %s23
    %s40 = sphi 0, %s24
    %s44 = sphi 0, %s44
    %s46 = sphi 0, %s44
    %s47 = sphi 0, %s46
    %s61 = sphi 0, %s47
    %s67 = sphi 0, %s69
    %s70 = sphi 0, %s67
    %s71 = sphi 0, %s70
    %s87 = sphi 0, %s71
    %s93 = sphi 0, %s95
    %s96 = sphi 0, %s93
    %s97 = sphi 0, %s96
    %s113 = sphi 0, %s97
  $region4: #{double_conv_forward.3} parent=0 // loop_header_branch
    %13 = sbr.rel (%p11) target = $region8
  $region5: #{double_conv_forward.3} parent=0 // loop_body
    %s15 = ssub.s32 %s10, 1
    %s16 = ssub.s32 %s10, 2
    %s17 = sadd.s32 %s10, 1
    %s18 = ssub.s32 %s10, %s17
    %p19 = scmp.eq.s32.totalorder %s18, 0
    %s21 = sadd.s32 %s20, 1
    %s22 = scalar_select %p19, %s20, %s21
    %p25 = pneg %p19
    %p26 = scmp.eq.s32.totalorder %s10, 1
    %p27 = por %p25, %p26
    %p28 = scmp.ne.s32.totalorder %s20, %s23
    %p29 = scmp.eq.s32.totalorder %s10, 0
    %p30 = por %p28, %p29
    %p31 = scmp.ne.s32.totalorder %s20, %s23
    %p32 = scmp.eq.s32.totalorder %s15, 1
    %p33 = por %p31, %p32
    %p34 = scmp.ne.s32.totalorder %s23, %s24
    %p35 = scmp.eq.s32.totalorder %s15, 0
    %p36 = por %p34, %p35
    %p37 = scmp.ne.s32.totalorder %s23, %s24
    %p38 = scmp.eq.s32.totalorder %s16, 1
    %p39 = por %p37, %p38
    %p41 = scmp.ne.s32.totalorder %s24, %s40
    %p42 = scmp.eq.s32.totalorder %s16, 0
    %p43 = por %p41, %p42
    %s45 = sadd.s32 %s44, 1
    %p48 = scmp.eq.s32.totalorder %s10, 1
    %p49 = scmp.ne.s32.totalorder %s44, %s46
    %p50 = scmp.eq.s32.totalorder %s10, 0
    %p51 = por %p49, %p50
    %p52 = scmp.ne.s32.totalorder %s44, %s46
    %p53 = scmp.eq.s32.totalorder %s15, 1
    %p54 = por %p52, %p53
    %p55 = scmp.ne.s32.totalorder %s46, %s47
    %p56 = scmp.eq.s32.totalorder %s15, 0
    %p57 = por %p55, %p56
    %p58 = scmp.ne.s32.totalorder %s46, %s47
    %p59 = scmp.eq.s32.totalorder %s16, 1
    %p60 = por %p58, %p59
    %p62 = scmp.ne.s32.totalorder %s47, %s61
    %p63 = scmp.eq.s32.totalorder %s16, 0
    %p64 = por %p62, %p63
    %s65 = ssub.s32 %s10, %s17
    %p66 = scmp.eq.s32.totalorder %s65, 0
    %s68 = sadd.s32 %s67, 1
    %s69 = scalar_select %p66, %s67, %s68
    %p72 = pneg %p66
    %p73 = scmp.eq.s32.totalorder %s10, 1
    %p74 = por %p72, %p73
    %p75 = scmp.ne.s32.totalorder %s67, %s70
    %p76 = scmp.eq.s32.totalorder %s10, 0
    %p77 = por %p75, %p76
    %p78 = scmp.ne.s32.totalorder %s67, %s70
    %p79 = scmp.eq.s32.totalorder %s15, 1
    %p80 = por %p78, %p79
    %p81 = scmp.ne.s32.totalorder %s70, %s71
    %p82 = scmp.eq.s32.totalorder %s15, 0
    %p83 = por %p81, %p82
    %p84 = scmp.ne.s32.totalorder %s70, %s71
    %p85 = scmp.eq.s32.totalorder %s16, 1
    %p86 = por %p84, %p85
    %p88 = scmp.ne.s32.totalorder %s71, %s87
    %p89 = scmp.eq.s32.totalorder %s16, 0
    %p90 = por %p88, %p89
    %s91 = ssub.s32 %s10, %s17
    %p92 = scmp.eq.s32.totalorder %s91, 0
    %s94 = sadd.s32 %s93, 1
    %s95 = scalar_select %p92, %s93, %s94
    %p98 = pneg %p92
    %p99 = scmp.eq.s32.totalorder %s10, 1
    %p100 = por %p98, %p99
    %p101 = scmp.ne.s32.totalorder %s93, %s96
    %p102 = scmp.eq.s32.totalorder %s10, 0
    %p103 = por %p101, %p102
    %p104 = scmp.ne.s32.totalorder %s93, %s96
    %p105 = scmp.eq.s32.totalorder %s15, 1
    %p106 = por %p104, %p105
    %p107 = scmp.ne.s32.totalorder %s96, %s97
    %p108 = scmp.eq.s32.totalorder %s15, 0
    %p109 = por %p107, %p108
    %p110 = scmp.ne.s32.totalorder %s96, %s97
    %p111 = scmp.eq.s32.totalorder %s16, 1
    %p112 = por %p110, %p111
    %p114 = scmp.ne.s32.totalorder %s97, %s113
    %p115 = scmp.eq.s32.totalorder %s16, 0
    %p116 = por %p114, %p115
    %p117 = scmp.le.s32.totalorder 1, %s10
    %p118 = scmp.lt.s32.totalorder %s10, 3
    %p119 = pnand %p117, %p118
    %p120 = pneg %p119
    // Predicated region
    $region9: #{double_conv_forward.3} parent=5 // pred_check
      _
    $region10: #{double_conv_forward.3} parent=5 // pred_check_branch
      %122 = sbr.rel (%p119) target = $region12
    $region11: #{double_conv_forward.3} parent=5 // pred_region
      %s123 = ssub.s32 %s10, 1
      // Predicated region
      $region13: #{double_conv_forward.3} parent=11 // pred_check
        %p124 = pneg %p57
      $region14: #{double_conv_forward.3} parent=11 // pred_check_branch
        %126 = sbr.rel (%p124) target = $region16
      $region15: #{double_conv_forward.3} parent=11 // pred_region
        _
      $region16: #{double_conv_forward.3} parent=11 // pred_fallthru
        _
    $region12: #{double_conv_forward.3} parent=5 // pred_fallthru
      _
    %p127 = scmp.lt.s32.totalorder %s10, 2
    // Predicated region
    $region17: #{double_conv_forward.3} parent=5 // pred_check
      %p128 = pneg %p127
    $region18: #{double_conv_forward.3} parent=5 // pred_check_branch
      %130 = sbr.rel (%p128) target = $region20
    $region19: #{double_conv_forward.3} parent=5 // pred_region
      // Predicated region
      $region21: #{double_conv_forward.3} parent=19 // pred_check
        %p131 = pneg %p30
      $region22: #{double_conv_forward.3} parent=19 // pred_check_branch
        %133 = sbr.rel (%p131) target = $region24
      $region23: #{double_conv_forward.3} parent=19 // pred_region
        %p134 = scmp.lt.s32.totalorder %s10, 1
        %s135 = scalar_select %p134, %s10, 1
        %s136 = smul.addr %s135, 2
        %s137 = smul.addr %s136, 4
        %s138 = scalar_lea.vmem %s0, %s137
      $region24: #{double_conv_forward.3} parent=19 // pred_fallthru
        _
    $region20: #{double_conv_forward.3} parent=5 // pred_fallthru
      _
    %p139 = scmp.le.s32.totalorder 1, %s10
    %p140 = scmp.lt.s32.totalorder %s10, 3
    %p141 = pnand %p139, %p140
    %p142 = pneg %p141
    // Predicated region
    $region25: #{double_conv_forward.3} parent=5 // pred_check
      _
    $region26: #{double_conv_forward.3} parent=5 // pred_check_branch
      %144 = sbr.rel (%p141) target = $region28
    $region27: #{double_conv_forward.3} parent=5 // pred_region
      %s145 = ssub.s32 %s10, 1
      %p146 = scmp.lt.s32.totalorder %s15, 1
      %s147 = scalar_select %p146, %s15, 1
      %s148 = smul.addr %s147, 2
      %s149 = smul.addr %s148, 4
      %s150 = scalar_lea.vmem %s0, %s149
      %p151 = pneg %p36
      %p152 = pneg %p33
      %p153 = pneg %p57
      %p154 = pneg %p54
      %p155 = pneg %p83
      %p156 = pneg %p80
      %p157 = scmp.lt.s32.totalorder %s15, 1
      %s158 = scalar_select %p157, %s15, 1
      %s159 = smul.addr %s158, 2
      %s160 = smul.addr %s159, 8
      %s161 = scalar_lea.vmem %s2, %s160
      %p162 = pneg %p109
      %p163 = pneg %p106
      %p164 = scmp.lt.s32.totalorder %s15, 1
      %s165 = scalar_select %p164, %s15, 1
      %s166 = smul.addr %s165, 8
      %s167 = scalar_lea.vmem %s3, %s166
      %p168 = scmp.lt.s32.totalorder %s15, 1
      %s169 = scalar_select %p168, %s15, 1
      %s170 = smul.addr %s169, 2
      %s171 = smul.addr %s170, 4
      %s172 = scalar_lea.vmem %s0, %s171
      %p173 = scmp.lt.s32.totalorder %s15, 1
      %s174 = scalar_select %p173, %s15, 1
      %s175 = smul.addr %s174, 2
      %s176 = smul.addr %s175, 8
      %s177 = scalar_lea.vmem %s2, %s176
      %p178 = scmp.lt.s32.totalorder %s15, 1
      %s179 = scalar_select %p178, %s15, 1
      %s180 = smul.addr %s179, 8
      %s181 = scalar_lea.vmem %s3, %s180
      %v183 = vlaneseq
      %v184 = vand.u32 %v183, 127
      %v185 = vadd.s32 %v184, 128
      %vm186 = vcmp.lt.s32.totalorder %v184, 0
      %v187 = vsub.s32 0, %v184
      %v188 = vsel %vm186, %v187, %v184
      %v189 = vshrl.u32 %v188, 4
      %v190 = vand.u32 %v188, 15
      %v191 = vsub.s32 0, %v190
      %v192 = vsel %vm186, %v191, %v190
      %vm193 = vcmp.lt.s32.totalorder %v185, 0
      %v194 = vsub.s32 0, %v185
      %v195 = vsel %vm193, %v194, %v185
      %v196 = vshrl.u32 %v195, 4
      %v197 = vand.u32 %v195, 15
      %v198 = vsub.s32 0, %v197
      %v199 = vsel %vm193, %v198, %v197
      %vm200 = vcmp.ne.s32.totalorder %v192, 0
      %vm201 = vcmp.ne.s32.totalorder %v199, 0
      %vm202 = vcmp.lt.s32.totalorder %v192, 0
      %vm203 = vcmp.lt.s32.totalorder %v199, 0
      %vm204 = vmand %vm202, %vm200
      %vm205 = vmand %vm203, %vm201
      %v206 = vadd.s32 %v192, 16
      %v207 = vadd.s32 %v199, 16
      %v208 = vsel %vm204, %v206, %v192
      %v209 = vsel %vm205, %v207, %v199
      %vm210 = vcmp.gt.s32.totalorder %v208, 0
      %vm211 = vcmp.gt.s32.totalorder %v209, 0
      %vm212 = vcmp.lt.s32.totalorder %v208, 15
      %vm213 = vcmp.lt.s32.totalorder %v209, 15
      %v214 = vld [vmem:[%s172] sm:$0xff]
      %216 = vst [vmem:[#allocation1] ss:$2 sm:$0xff] %v214
      %v217 = vld.sshfl [vmem:[#allocation1] sm:$0xff pattern:$0x75316420]
      %v218 = vld.sshfl [vmem:[#allocation1 + $0x8] sm:$0xff pattern:$0x75316420]
      %219 = vrot.lane.b32.xlu0 %v217, 17
      %v220 = vpop.permute.xlu0 %219
      %221 = vrot.lane.b32.xlu0 %v218, 17
      %v222 = vpop.permute.xlu0 %221
      %vm223 = vcmask 138240
      %v224 = vsel %vm223, %v220, %v222
      %v228 = vsel %vm223, 0.0, %v220
      %v229 = vsel %vm223, %v222, 0.0
      %v230 = vsel %vm210, 1, 0
      %v231 = vsel %vm211, 1, 0
      %vm232 = vcmp.eq.s32.totalorder %v230, 1
      %vm233 = vcmp.eq.s32.totalorder %v231, 1
      %v234 = vsel %vm232, %v228, 0.0
      %v235 = vsel %vm233, %v224, 0.0
      %v236 = vpack.c.bf16 %v235, %v234
      %237 = vst [vmem:[#allocation2] sm:$0x33] %v236
      %v238 = vpack.c.bf16 %v224, %v228
      %v239 = vpack.c.bf16 %v229, %v229
      %v242 = vrot.slane %v238, 6
      %v243 = vrot.slane %v239, 6
      %244 = vrot.lane.b32.xlu0 %v242, 127
      %v245 = vpop.permute.xlu0 %244
      %246 = vrot.lane.b32.xlu0 %v243, 127
      %v247 = vpop.permute.xlu0 %246
      %v248 = vrot.slane %v245, 4
      %v249 = vrot.slane %v247, 4
      %vm250 = vcmask 1043456
      %v251 = vsel %vm250, %v248, %v249
      %vm252 = vcmask 1039360
      %v253 = vsel %vm252, %v245, %v251
      %255 = vst [vmem:[#allocation2] sm:$0xcc] %v253
      %v256 = vsel %vm212, 1, 0
      %v257 = vsel %vm213, 1, 0
      %vm258 = vcmp.eq.s32.totalorder %v256, 1
      %vm259 = vcmp.eq.s32.totalorder %v257, 1
      %262 = vrot.lane.b32.xlu0 %v228, 126
      %v263 = vpop.permute.xlu0 %262
      %264 = vrot.lane.b32.xlu0 %v224, 126
      %v265 = vpop.permute.xlu0 %264
      %266 = vrot.lane.b32.xlu0 %v229, 126
      %v267 = vpop.permute.xlu0 %266
      %vm268 = vcmask 1031168
      %v269 = vsel %vm268, %v263, %v265
      %v270 = vsel %vm268, %v265, %v267
      %v273 = vsel %vm258, %v269, 0.0
      %v274 = vsel %vm259, %v270, 0.0
      %v275 = vpack.c.bf16 %v274, %v273
      %276 = vst [vmem:[#allocation2 + $0x8] sm:$0x33] %v275
      %277 = vrot.lane.b32.xlu0 %v228, 112
      %v278 = vpop.permute.xlu0 %277
      %279 = vrot.lane.b32.xlu0 %v224, 112
      %v280 = vpop.permute.xlu0 %279
      %281 = vrot.lane.b32.xlu0 %v229, 112
      %v282 = vpop.permute.xlu0 %281
      %vm283 = vcmask 916480
      %v284 = vsel %vm283, %v278, %v280
      %v285 = vsel %vm283, %v280, %v282
      %v288 = vsel %vm232, %v284, 0.0
      %v289 = vsel %vm233, %v285, 0.0
      %v290 = vpack.c.bf16 %v289, %v288
      %v292 = vrot.slane %v290, 6
      %294 = vst [vmem:[#allocation2 + $0x8] sm:$0xcc] %v292
      %295 = vrot.lane.b32.xlu0 %v238, 111
      %v296 = vpop.permute.xlu0 %295
      %297 = vrot.lane.b32.xlu0 %v239, 111
      %v298 = vpop.permute.xlu0 %297
      %v299 = vrot.slane %v296, 4
      %v300 = vrot.slane %v298, 4
      %v301 = vsel %vm250, %v299, %v300
      %vm302 = vcmask 908288
      %v303 = vsel %vm302, %v296, %v301
      %305 = vst [vmem:[#allocation2 + $0x10] sm:$0x33] %v303
      %306 = vrot.lane.b32.xlu0 %v228, 110
      %v307 = vpop.permute.xlu0 %306
      %308 = vrot.lane.b32.xlu0 %v224, 110
      %v309 = vpop.permute.xlu0 %308
      %310 = vrot.lane.b32.xlu0 %v229, 110
      %v311 = vpop.permute.xlu0 %310
      %vm312 = vcmask 900096
      %v313 = vsel %vm312, %v307, %v309
      %v314 = vsel %vm312, %v309, %v311
      %v317 = vsel %vm258, %v313, 0.0
      %v318 = vsel %vm259, %v314, 0.0
      %v319 = vpack.c.bf16 %v318, %v317
      %v321 = vrot.slane %v319, 6
      %323 = vst [vmem:[#allocation2 + $0x10] sm:$0xcc] %v321
      %324 = vrot.lane.b32.xlu0 %v228, 96
      %v325 = vpop.permute.xlu0 %324
      %326 = vrot.lane.b32.xlu0 %v224, 96
      %v327 = vpop.permute.xlu0 %326
      %328 = vrot.lane.b32.xlu0 %v229, 96
      %v329 = vpop.permute.xlu0 %328
      %vm330 = vcmask 785408
      %v331 = vsel %vm330, %v325, %v327
      %v332 = vsel %vm330, %v327, %v329
      %v335 = vsel %vm232, %v331, 0.0
      %v336 = vsel %vm233, %v332, 0.0
      %v337 = vpack.c.bf16 %v336, %v335
      %338 = vst [vmem:[#allocation2 + $0x18] sm:$0x33] %v337
      %339 = vrot.lane.b32.xlu0 %v242, 95
      %v340 = vpop.permute.xlu0 %339
      %341 = vrot.lane.b32.xlu0 %v243, 95
      %v342 = vpop.permute.xlu0 %341
      %v343 = vrot.slane %v340, 4
      %v344 = vrot.slane %v342, 4
      %v345 = vsel %vm250, %v343, %v344
      %vm346 = vcmask 777216
      %v347 = vsel %vm346, %v340, %v345
      %349 = vst [vmem:[#allocation2 + $0x18] sm:$0xcc] %v347
      %350 = vrot.lane.b32.xlu0 %v228, 94
      %v351 = vpop.permute.xlu0 %350
      %352 = vrot.lane.b32.xlu0 %v224, 94
      %v353 = vpop.permute.xlu0 %352
      %354 = vrot.lane.b32.xlu0 %v229, 94
      %v355 = vpop.permute.xlu0 %354
      %vm356 = vcmask 769024
      %v357 = vsel %vm356, %v351, %v353
      %v358 = vsel %vm356, %v353, %v355
      %v361 = vsel %vm258, %v357, 0.0
      %v362 = vsel %vm259, %v358, 0.0
      %v363 = vpack.c.bf16 %v362, %v361
      %364 = vst [vmem:[#allocation2 + $0x20] sm:$0x33] %v363
      %v365 = vld [vmem:[%s1] sm:$0xf]
      %v366 = vld [vmem:[#allocation2] sm:$0xff]
      %v367 = vld [vmem:[#allocation2 + $0x8] sm:$0xff]
      %v368 = vld [vmem:[#allocation2 + $0x10] sm:$0xff]
      %v369 = vld [vmem:[#allocation2 + $0x18] sm:$0xff]
      %v370 = vld [vmem:[#allocation2 + $0x20] sm:$0x33]
      %v376 = vunpack.c.l.b16 %v366
      %v377 = vunpack.c.h.b16 %v366
      %v378 = vunpack.c.l.b16 %v367
      %v379 = vunpack.c.h.b16 %v367
      %v380 = vunpack.c.l.b16 %v368
      %v381 = vunpack.c.h.b16 %v368
      %v382 = vunpack.c.l.b16 %v369
      %v383 = vunpack.c.h.b16 %v369
      %v384 = vunpack.c.l.b16 %v370
      %v385 = vunpack.c.h.b16 %v370
      %v386 = vpack.c.b16 %v378, %v376
      %v387 = vpack.c.b16 %v379, %v377
      %v388 = vpack.c.b16 %v382, %v380
      %v389 = vpack.c.b16 %v383, %v381
      %v390 = vpack.c.b16 %v384, %v384
      %v391 = vpack.c.b16 %v385, %v385
      %vm396 = vcmask 293888
      %v398 = vsel %vm396, %v365, 0
      %vm400 = vcmask 1041408
      %v402 = vsel %vm400, %v390, 0
      %v405 = vsel %vm400, %v391, 0
      %407 = vmatpush.bf16.msra.mxu0 0
      %408 = vmatpush.bf16.msra.mxu0 0
      %409 = vmatpush.bf16.msra.mxu0 0
      %410 = vmatpush.bf16.msra.mxu0 0
      %411 = vmatpush.bf16.msra.mxu0 0
      %412 = vmatpush.bf16.msra.mxu0 %v402
      %413 = vmatpush.bf16.msra.mxu0 %v388
      %414 = vmatpush.bf16.msra.mxu0 %v386
      %415 = vmatmul.bf16.gmra.mxu0 %v398
      %v416 = vpop.f32.mrf.mxu0
      %v417 = vadd.f32 0.0, %v416
      %v418 = vpop.f32.mrf.mxu0
      %419 = vdwg.mxu0
      %420 = vmatpush.bf16.msra.mxu0 0
      %421 = vmatpush.bf16.msra.mxu0 0
      %422 = vmatpush.bf16.msra.mxu0 0
      %423 = vmatpush.bf16.msra.mxu0 0
      %424 = vmatpush.bf16.msra.mxu0 0
      %425 = vmatpush.bf16.msra.mxu0 %v405
      %426 = vmatpush.bf16.msra.mxu0 %v389
      %427 = vmatpush.bf16.msra.mxu0 %v387
      %428 = vmatmul.bf16.gmra.mxu0 %v398
      %v429 = vpop.f32.mrf.mxu0
      %v430 = vadd.f32 0.0, %v429
      %v431 = vpop.f32.mrf.mxu0
      %432 = vdwg.mxu0
      %v433 = vadd.f32 %v417, %v430
      %434 = vadd.xlane.f32.xlu0 %v433
      %v435 = vpop.xlane.xlu0 %434
      %v436 = vmul.f32 %v417, %v417
      %v437 = vmul.f32 %v430, %v430
      %v438 = vadd.f32 %v436, %v437
      %439 = vadd.xlane.f32.xlu0 %v438
      %v440 = vpop.xlane.xlu0 %439
      %vm441 = vcmask 7168
      %v442 = vsel %vm441, %v435, %v440
      %vm443 = vcmask 15360
      %444 = vst.msk [vmem:[%s181] sm:$0xff] %vm443, %v442
      %445 = vst [vmem:[%s177] sm:$0xff] %v417
      %446 = vst [vmem:[%s177 + $0x8] sm:$0xff] %v430
      %p447 = scmp.lt.s32.totalorder %s15, 1
      %s448 = scalar_select %p447, %s15, 1
      %s449 = smul.addr %s448, 2
      %s450 = smul.addr %s449, 8
      %s451 = scalar_lea.vmem %s2, %s450
      %p452 = scmp.lt.s32.totalorder %s15, 1
      %s453 = scalar_select %p452, %s15, 1
      %s454 = smul.addr %s453, 8
      %s455 = scalar_lea.vmem %s3, %s454
      // Predicated region
      $region29: #{double_conv_forward.3} parent=27 // pred_check
        %p456 = pneg %p80
      $region30: #{double_conv_forward.3} parent=27 // pred_check_branch
        %458 = sbr.rel (%p456) target = $region32
      $region31: #{double_conv_forward.3} parent=27 // pred_region
        _
      $region32: #{double_conv_forward.3} parent=27 // pred_fallthru
        _
      // Predicated region
      $region33: #{double_conv_forward.3} parent=27 // pred_check
        %p459 = pneg %p106
      $region34: #{double_conv_forward.3} parent=27 // pred_check_branch
        %461 = sbr.rel (%p459) target = $region36
      $region35: #{double_conv_forward.3} parent=27 // pred_region
        _
      $region36: #{double_conv_forward.3} parent=27 // pred_fallthru
        _
    $region28: #{double_conv_forward.3} parent=5 // pred_fallthru
      _
    %p462 = scmp.le.s32.totalorder 2, %s10
    // Predicated region
    $region37: #{double_conv_forward.3} parent=5 // pred_check
      %p463 = pneg %p462
    $region38: #{double_conv_forward.3} parent=5 // pred_check_branch
      %465 = sbr.rel (%p463) target = $region40
    $region39: #{double_conv_forward.3} parent=5 // pred_region
      %s466 = ssub.s32 %s10, 2
      // Predicated region
      $region41: #{double_conv_forward.3} parent=39 // pred_check
        %p467 = pneg %p86
      $region42: #{double_conv_forward.3} parent=39 // pred_check_branch
        %469 = sbr.rel (%p467) target = $region44
      $region43: #{double_conv_forward.3} parent=39 // pred_region
        %p470 = scmp.lt.s32.totalorder %s16, 1
        %s471 = scalar_select %p470, %s16, 1
        %s472 = smul.addr %s471, 2
        %s473 = smul.addr %s472, 8
        %s474 = scalar_lea.vmem %s2, %s473
      $region44: #{double_conv_forward.3} parent=39 // pred_fallthru
        _
      // Predicated region
      $region45: #{double_conv_forward.3} parent=39 // pred_check
        %p475 = pneg %p112
      $region46: #{double_conv_forward.3} parent=39 // pred_check_branch
        %477 = sbr.rel (%p475) target = $region48
      $region47: #{double_conv_forward.3} parent=39 // pred_region
        %p478 = scmp.lt.s32.totalorder %s16, 1
        %s479 = scalar_select %p478, %s16, 1
        %s480 = smul.addr %s479, 8
        %s481 = scalar_lea.vmem %s3, %s480
      $region48: #{double_conv_forward.3} parent=39 // pred_fallthru
        _
    $region40: #{double_conv_forward.3} parent=5 // pred_fallthru
      _
  $region6: #{double_conv_forward.3} parent=0 // loop_footer
    %s14 = sadd.s32 1, %s10
  $region7: #{double_conv_forward.3} parent=0 // loop_footer_branch
    %9 = sbr.rel target = $region3
  $region8: #{double_conv_forward.3} parent=0 // loop_exit
    _

// kernel: double_conv_forward.4
$region0: #{double_conv_forward.4}
  #allocation0 [shape = 'u32[]', space=smem, size = 0x4, offset = 0x4, fixed_abs, tag = 'smem constant byte address 0x4 - core index']
  #allocation1 [shape = 'u32[72,128]{1,0:T(1,128)}', space=vmem, size = 0x9000, scoped, tag = 'internal scratch']
  #allocation2 [shape = 'bf16[72,256]{1,0:T(8,128)(2,1)}', space=vmem, size = 0x9000, scoped, tag = 'scratch operand']
  %s0 = inlined_call_operand.vmem [shape: f32[2,8,256], index: 0, kind: input, shape index: {}]
  %s1 = inlined_call_operand.vmem [shape: f32[8,1], index: 1, kind: input, shape index: {}]
  %s2 = inlined_call_operand.vmem [shape: f32[8,1], index: 2, kind: input, shape index: {}]
  %s3 = inlined_call_operand.vmem [shape: bf16[8,72], index: 3, kind: input, shape index: {}]
  %s4 = inlined_call_operand.vmem [shape: f32[2,8,256], index: 4, kind: output, shape index: {0}]
  %s5 = inlined_call_operand.vmem [shape: f32[2,8,2], index: 5, kind: output, shape index: {1}]
  %6 = xla_tuple %s4, %s5
  %s7 = sld [smem:[#allocation0]]
  $region57: #{double_conv_forward.4} parent=0
    _
  %s9 = ssub.s32 1, %s7
  %s10 = scalar_select 0, %s9, %s7
  loop: start=0, step=1, limit=4
  $region2: #{double_conv_forward.4} parent=0 // loop_pre_header
    _
  $region3: #{double_conv_forward.4} parent=0 // loop_header
    %s12 = sphi 0, %s16
    %p13 = scmp.ge.s32.totalorder %s12, 4
    %s22 = sphi 0, %s24
    %s25 = sphi 0, %s22
    %s26 = sphi 0, %s25
    %s42 = sphi 0, %s26
    %s46 = sphi 0, %s46
    %s48 = sphi 0, %s46
    %s49 = sphi 0, %s48
    %s63 = sphi 0, %s49
    %s67 = sphi 0, %s67
    %s69 = sphi 0, %s67
    %s70 = sphi 0, %s69
    %s84 = sphi 0, %s70
    %s88 = sphi 0, %s88
    %s90 = sphi 0, %s88
    %s91 = sphi 0, %s90
    %s105 = sphi 0, %s91
    %s111 = sphi 0, %s113
    %s114 = sphi 0, %s111
    %s115 = sphi 0, %s114
    %s131 = sphi 0, %s115
    %s137 = sphi 0, %s139
    %s140 = sphi 0, %s137
    %s141 = sphi 0, %s140
    %s157 = sphi 0, %s141
  $region4: #{double_conv_forward.4} parent=0 // loop_header_branch
    %15 = sbr.rel (%p13) target = $region8
  $region5: #{double_conv_forward.4} parent=0 // loop_body
    %s17 = ssub.s32 %s12, 1
    %s18 = ssub.s32 %s12, 2
    %s19 = sadd.s32 %s12, 1
    %s20 = ssub.s32 %s12, %s19
    %p21 = scmp.eq.s32.totalorder %s20, 0
    %s23 = sadd.s32 %s22, 1
    %s24 = scalar_select %p21, %s22, %s23
    %p27 = pneg %p21
    %p28 = scmp.eq.s32.totalorder %s12, 1
    %p29 = por %p27, %p28
    %p30 = scmp.ne.s32.totalorder %s22, %s25
    %p31 = scmp.eq.s32.totalorder %s12, 0
    %p32 = por %p30, %p31
    %p33 = scmp.ne.s32.totalorder %s22, %s25
    %p34 = scmp.eq.s32.totalorder %s17, 1
    %p35 = por %p33, %p34
    %p36 = scmp.ne.s32.totalorder %s25, %s26
    %p37 = scmp.eq.s32.totalorder %s17, 0
    %p38 = por %p36, %p37
    %p39 = scmp.ne.s32.totalorder %s25, %s26
    %p40 = scmp.eq.s32.totalorder %s18, 1
    %p41 = por %p39, %p40
    %p43 = scmp.ne.s32.totalorder %s26, %s42
    %p44 = scmp.eq.s32.totalorder %s18, 0
    %p45 = por %p43, %p44
    %s47 = sadd.s32 %s46, 1
    %p50 = scmp.eq.s32.totalorder %s12, 1
    %p51 = scmp.ne.s32.totalorder %s46, %s48
    %p52 = scmp.eq.s32.totalorder %s12, 0
    %p53 = por %p51, %p52
    %p54 = scmp.ne.s32.totalorder %s46, %s48
    %p55 = scmp.eq.s32.totalorder %s17, 1
    %p56 = por %p54, %p55
    %p57 = scmp.ne.s32.totalorder %s48, %s49
    %p58 = scmp.eq.s32.totalorder %s17, 0
    %p59 = por %p57, %p58
    %p60 = scmp.ne.s32.totalorder %s48, %s49
    %p61 = scmp.eq.s32.totalorder %s18, 1
    %p62 = por %p60, %p61
    %p64 = scmp.ne.s32.totalorder %s49, %s63
    %p65 = scmp.eq.s32.totalorder %s18, 0
    %p66 = por %p64, %p65
    %s68 = sadd.s32 %s67, 1
    %p71 = scmp.eq.s32.totalorder %s12, 1
    %p72 = scmp.ne.s32.totalorder %s67, %s69
    %p73 = scmp.eq.s32.totalorder %s12, 0
    %p74 = por %p72, %p73
    %p75 = scmp.ne.s32.totalorder %s67, %s69
    %p76 = scmp.eq.s32.totalorder %s17, 1
    %p77 = por %p75, %p76
    %p78 = scmp.ne.s32.totalorder %s69, %s70
    %p79 = scmp.eq.s32.totalorder %s17, 0
    %p80 = por %p78, %p79
    %p81 = scmp.ne.s32.totalorder %s69, %s70
    %p82 = scmp.eq.s32.totalorder %s18, 1
    %p83 = por %p81, %p82
    %p85 = scmp.ne.s32.totalorder %s70, %s84
    %p86 = scmp.eq.s32.totalorder %s18, 0
    %p87 = por %p85, %p86
    %s89 = sadd.s32 %s88, 1
    %p92 = scmp.eq.s32.totalorder %s12, 1
    %p93 = scmp.ne.s32.totalorder %s88, %s90
    %p94 = scmp.eq.s32.totalorder %s12, 0
    %p95 = por %p93, %p94
    %p96 = scmp.ne.s32.totalorder %s88, %s90
    %p97 = scmp.eq.s32.totalorder %s17, 1
    %p98 = por %p96, %p97
    %p99 = scmp.ne.s32.totalorder %s90, %s91
    %p100 = scmp.eq.s32.totalorder %s17, 0
    %p101 = por %p99, %p100
    %p102 = scmp.ne.s32.totalorder %s90, %s91
    %p103 = scmp.eq.s32.totalorder %s18, 1
    %p104 = por %p102, %p103
    %p106 = scmp.ne.s32.totalorder %s91, %s105
    %p107 = scmp.eq.s32.totalorder %s18, 0
    %p108 = por %p106, %p107
    %s109 = ssub.s32 %s12, %s19
    %p110 = scmp.eq.s32.totalorder %s109, 0
    %s112 = sadd.s32 %s111, 1
    %s113 = scalar_select %p110, %s111, %s112
    %p116 = pneg %p110
    %p117 = scmp.eq.s32.totalorder %s12, 1
    %p118 = por %p116, %p117
    %p119 = scmp.ne.s32.totalorder %s111, %s114
    %p120 = scmp.eq.s32.totalorder %s12, 0
    %p121 = por %p119, %p120
    %p122 = scmp.ne.s32.totalorder %s111, %s114
    %p123 = scmp.eq.s32.totalorder %s17, 1
    %p124 = por %p122, %p123
    %p125 = scmp.ne.s32.totalorder %s114, %s115
    %p126 = scmp.eq.s32.totalorder %s17, 0
    %p127 = por %p125, %p126
    %p128 = scmp.ne.s32.totalorder %s114, %s115
    %p129 = scmp.eq.s32.totalorder %s18, 1
    %p130 = por %p128, %p129
    %p132 = scmp.ne.s32.totalorder %s115, %s131
    %p133 = scmp.eq.s32.totalorder %s18, 0
    %p134 = por %p132, %p133
    %s135 = ssub.s32 %s12, %s19
    %p136 = scmp.eq.s32.totalorder %s135, 0
    %s138 = sadd.s32 %s137, 1
    %s139 = scalar_select %p136, %s137, %s138
    %p142 = pneg %p136
    %p143 = scmp.eq.s32.totalorder %s12, 1
    %p144 = por %p142, %p143
    %p145 = scmp.ne.s32.totalorder %s137, %s140
    %p146 = scmp.eq.s32.totalorder %s12, 0
    %p147 = por %p145, %p146
    %p148 = scmp.ne.s32.totalorder %s137, %s140
    %p149 = scmp.eq.s32.totalorder %s17, 1
    %p150 = por %p148, %p149
    %p151 = scmp.ne.s32.totalorder %s140, %s141
    %p152 = scmp.eq.s32.totalorder %s17, 0
    %p153 = por %p151, %p152
    %p154 = scmp.ne.s32.totalorder %s140, %s141
    %p155 = scmp.eq.s32.totalorder %s18, 1
    %p156 = por %p154, %p155
    %p158 = scmp.ne.s32.totalorder %s141, %s157
    %p159 = scmp.eq.s32.totalorder %s18, 0
    %p160 = por %p158, %p159
    %p161 = scmp.le.s32.totalorder 1, %s12
    %p162 = scmp.lt.s32.totalorder %s12, 3
    %p163 = pnand %p161, %p162
    %p164 = pneg %p163
    // Predicated region
    $region9: #{double_conv_forward.4} parent=5 // pred_check
      _
    $region10: #{double_conv_forward.4} parent=5 // pred_check_branch
      %166 = sbr.rel (%p163) target = $region12
    $region11: #{double_conv_forward.4} parent=5 // pred_region
      %s167 = ssub.s32 %s12, 1
      // Predicated region
      $region13: #{double_conv_forward.4} parent=11 // pred_check
        %p168 = pneg %p59
      $region14: #{double_conv_forward.4} parent=11 // pred_check_branch
        %170 = sbr.rel (%p168) target = $region16
      $region15: #{double_conv_forward.4} parent=11 // pred_region
        _
      $region16: #{double_conv_forward.4} parent=11 // pred_fallthru
        _
      // Predicated region
      $region17: #{double_conv_forward.4} parent=11 // pred_check
        %p171 = pneg %p80
      $region18: #{double_conv_forward.4} parent=11 // pred_check_branch
        %173 = sbr.rel (%p171) target = $region20
      $region19: #{double_conv_forward.4} parent=11 // pred_region
        _
      $region20: #{double_conv_forward.4} parent=11 // pred_fallthru
        _
      // Predicated region
      $region21: #{double_conv_forward.4} parent=11 // pred_check
        %p174 = pneg %p101
      $region22: #{double_conv_forward.4} parent=11 // pred_check_branch
        %176 = sbr.rel (%p174) target = $region24
      $region23: #{double_conv_forward.4} parent=11 // pred_region
        _
      $region24: #{double_conv_forward.4} parent=11 // pred_fallthru
        _
    $region12: #{double_conv_forward.4} parent=5 // pred_fallthru
      _
    %p177 = scmp.lt.s32.totalorder %s12, 2
    // Predicated region
    $region25: #{double_conv_forward.4} parent=5 // pred_check
      %p178 = pneg %p177
    $region26: #{double_conv_forward.4} parent=5 // pred_check_branch
      %180 = sbr.rel (%p178) target = $region28
    $region27: #{double_conv_forward.4} parent=5 // pred_region
      // Predicated region
      $region29: #{double_conv_forward.4} parent=27 // pred_check
        %p181 = pneg %p32
      $region30: #{double_conv_forward.4} parent=27 // pred_check_branch
        %183 = sbr.rel (%p181) target = $region32
      $region31: #{double_conv_forward.4} parent=27 // pred_region
        %p184 = scmp.lt.s32.totalorder %s12, 1
        %s185 = scalar_select %p184, %s12, 1
        %s186 = smul.addr %s185, 2
        %s187 = smul.addr %s186, 8
        %s188 = scalar_lea.vmem %s0, %s187
      $region32: #{double_conv_forward.4} parent=27 // pred_fallthru
        _
    $region28: #{double_conv_forward.4} parent=5 // pred_fallthru
      _
    %p189 = scmp.le.s32.totalorder 1, %s12
    %p190 = scmp.lt.s32.totalorder %s12, 3
    %p191 = pnand %p189, %p190
    %p192 = pneg %p191
    // Predicated region
    $region33: #{double_conv_forward.4} parent=5 // pred_check
      _
    $region34: #{double_conv_forward.4} parent=5 // pred_check_branch
      %194 = sbr.rel (%p191) target = $region36
    $region35: #{double_conv_forward.4} parent=5 // pred_region
      %s195 = ssub.s32 %s12, 1
      %p196 = scmp.lt.s32.totalorder %s17, 1
      %s197 = scalar_select %p196, %s17, 1
      %s198 = smul.addr %s197, 2
      %s199 = smul.addr %s198, 8
      %s200 = scalar_lea.vmem %s0, %s199
      %p201 = pneg %p38
      %p202 = pneg %p35
      %p203 = pneg %p59
      %p204 = pneg %p56
      %p205 = pneg %p80
      %p206 = pneg %p77
      %p207 = pneg %p101
      %p208 = pneg %p98
      %p209 = pneg %p127
      %p210 = pneg %p124
      %p211 = scmp.lt.s32.totalorder %s17, 1
      %s212 = scalar_select %p211, %s17, 1
      %s213 = smul.addr %s212, 2
      %s214 = smul.addr %s213, 8
      %s215 = scalar_lea.vmem %s4, %s214
      %p216 = pneg %p153
      %p217 = pneg %p150
      %p218 = scmp.lt.s32.totalorder %s17, 1
      %s219 = scalar_select %p218, %s17, 1
      %s220 = smul.addr %s219, 8
      %s221 = scalar_lea.vmem %s5, %s220
      %p222 = scmp.lt.s32.totalorder %s17, 1
      %s223 = scalar_select %p222, %s17, 1
      %s224 = smul.addr %s223, 2
      %s225 = smul.addr %s224, 8
      %s226 = scalar_lea.vmem %s0, %s225
      %p227 = scmp.lt.s32.totalorder %s17, 1
      %s228 = scalar_select %p227, %s17, 1
      %s229 = smul.addr %s228, 2
      %s230 = smul.addr %s229, 8
      %s231 = scalar_lea.vmem %s4, %s230
      %p232 = scmp.lt.s32.totalorder %s17, 1
      %s233 = scalar_select %p232, %s17, 1
      %s234 = smul.addr %s233, 8
      %s235 = scalar_lea.vmem %s5, %s234
      %v237 = vlaneseq
      %v238 = vand.u32 %v237, 127
      %v239 = vadd.s32 %v238, 128
      %vm240 = vcmp.lt.s32.totalorder %v238, 0
      %v241 = vsub.s32 0, %v238
      %v242 = vsel %vm240, %v241, %v238
      %v243 = vshrl.u32 %v242, 4
      %v244 = vand.u32 %v242, 15
      %v245 = vsub.s32 0, %v244
      %v246 = vsel %vm240, %v245, %v244
      %vm247 = vcmp.lt.s32.totalorder %v239, 0
      %v248 = vsub.s32 0, %v239
      %v249 = vsel %vm247, %v248, %v239
      %v250 = vshrl.u32 %v249, 4
      %v251 = vand.u32 %v249, 15
      %v252 = vsub.s32 0, %v251
      %v253 = vsel %vm247, %v252, %v251
      %vm254 = vcmp.ne.s32.totalorder %v246, 0
      %vm255 = vcmp.ne.s32.totalorder %v253, 0
      %vm256 = vcmp.lt.s32.totalorder %v246, 0
      %vm257 = vcmp.lt.s32.totalorder %v253, 0
      %vm258 = vmand %vm256, %vm254
      %vm259 = vmand %vm257, %vm255
      %v260 = vadd.s32 %v246, 16
      %v261 = vadd.s32 %v253, 16
      %v262 = vsel %vm258, %v260, %v246
      %v263 = vsel %vm259, %v261, %v253
      %vm264 = vcmp.gt.s32.totalorder %v262, 0
      %vm265 = vcmp.gt.s32.totalorder %v263, 0
      %vm266 = vcmp.lt.s32.totalorder %v262, 15
      %vm267 = vcmp.lt.s32.totalorder %v263, 15
      %v268 = vld [vmem:[%s1] sm:$0xff]
      %v269 = vld [vmem:[%s2] sm:$0xff]
      %v270 = vld [vmem:[%s226] sm:$0xff]
      %v271 = vld [vmem:[%s226 + $0x8] sm:$0xff]
      %273 = vset.pattern.permute.xlu0 0
      %274 = vperm.xlu0 %273, %v268
      %v275 = vpop.permute.xlu0 %274
      %v277 = vmul.f32 %v270, %v275
      %v278 = vmul.f32 %v271, %v275
      %280 = vset.pattern.permute.xlu0 0
      %281 = vperm.xlu0 %280, %v269
      %v282 = vpop.permute.xlu0 %281
      %v284 = vadd.f32 %v277, %v282
      %v285 = vadd.f32 %v278, %v282
      %v286 = vmax.f32 %v284, 0.0
      %v287 = vmax.f32 %v285, 0.0
      %290 = vrot.lane.b32.xlu0 %v286, 17
      %v291 = vpop.permute.xlu0 %290
      %292 = vrot.lane.b32.xlu0 %v287, 17
      %v293 = vpop.permute.xlu0 %292
      %vm294 = vcmask 138240
      %v295 = vsel %vm294, %v291, %v293
      %v299 = vsel %vm294, 0.0, %v291
      %v300 = vsel %vm294, %v293, 0.0
      %v301 = vsel %vm264, 1, 0
      %v302 = vsel %vm265, 1, 0
      %vm303 = vcmp.eq.s32.totalorder %v301, 1
      %vm304 = vcmp.eq.s32.totalorder %v302, 1
      %v305 = vsel %vm303, %v299, 0.0
      %v306 = vsel %vm304, %v295, 0.0
      %v307 = vpack.c.bf16 %v306, %v305
      %308 = vst [vmem:[#allocation2] sm:$0xff] %v307
      %v309 = vpack.c.bf16 %v295, %v299
      %v310 = vpack.c.bf16 %v300, %v300
      %313 = vrot.lane.b32.xlu0 %v309, 127
      %v314 = vpop.permute.xlu0 %313
      %315 = vrot.lane.b32.xlu0 %v310, 127
      %v316 = vpop.permute.xlu0 %315
      %v317 = vrot.slane %v314, 4
      %v318 = vrot.slane %v316, 4
      %vm319 = vcmask 1043456
      %v320 = vsel %vm319, %v317, %v318
      %vm321 = vcmask 1039360
      %v322 = vsel %vm321, %v314, %v320
      %324 = vst [vmem:[#allocation2 + $0x8] sm:$0xff] %v322
      %v325 = vsel %vm266, 1, 0
      %v326 = vsel %vm267, 1, 0
      %vm327 = vcmp.eq.s32.totalorder %v325, 1
      %vm328 = vcmp.eq.s32.totalorder %v326, 1
      %331 = vrot.lane.b32.xlu0 %v299, 126
      %v332 = vpop.permute.xlu0 %331
      %333 = vrot.lane.b32.xlu0 %v295, 126
      %v334 = vpop.permute.xlu0 %333
      %335 = vrot.lane.b32.xlu0 %v300, 126
      %v336 = vpop.permute.xlu0 %335
      %vm337 = vcmask 1031168
      %v338 = vsel %vm337, %v332, %v334
      %v339 = vsel %vm337, %v334, %v336
      %v342 = vsel %vm327, %v338, 0.0
      %v343 = vsel %vm328, %v339, 0.0
      %v344 = vpack.c.bf16 %v343, %v342
      %345 = vst [vmem:[#allocation2 + $0x10] sm:$0xff] %v344
      %346 = vrot.lane.b32.xlu0 %v299, 112
      %v347 = vpop.permute.xlu0 %346
      %348 = vrot.lane.b32.xlu0 %v295, 112
      %v349 = vpop.permute.xlu0 %348
      %350 = vrot.lane.b32.xlu0 %v300, 112
      %v351 = vpop.permute.xlu0 %350
      %vm352 = vcmask 916480
      %v353 = vsel %vm352, %v347, %v349
      %v354 = vsel %vm352, %v349, %v351
      %v357 = vsel %vm303, %v353, 0.0
      %v358 = vsel %vm304, %v354, 0.0
      %v359 = vpack.c.bf16 %v358, %v357
      %360 = vst [vmem:[#allocation2 + $0x18] sm:$0xff] %v359
      %361 = vrot.lane.b32.xlu0 %v309, 111
      %v362 = vpop.permute.xlu0 %361
      %363 = vrot.lane.b32.xlu0 %v310, 111
      %v364 = vpop.permute.xlu0 %363
      %v365 = vrot.slane %v362, 4
      %v366 = vrot.slane %v364, 4
      %v367 = vsel %vm319, %v365, %v366
      %vm368 = vcmask 908288
      %v369 = vsel %vm368, %v362, %v367
      %371 = vst [vmem:[#allocation2 + $0x20] sm:$0xff] %v369
      %372 = vrot.lane.b32.xlu0 %v299, 110
      %v373 = vpop.permute.xlu0 %372
      %374 = vrot.lane.b32.xlu0 %v295, 110
      %v375 = vpop.permute.xlu0 %374
      %376 = vrot.lane.b32.xlu0 %v300, 110
      %v377 = vpop.permute.xlu0 %376
      %vm378 = vcmask 900096
      %v379 = vsel %vm378, %v373, %v375
      %v380 = vsel %vm378, %v375, %v377
      %v383 = vsel %vm327, %v379, 0.0
      %v384 = vsel %vm328, %v380, 0.0
      %v385 = vpack.c.bf16 %v384, %v383
      %386 = vst [vmem:[#allocation2 + $0x28] sm:$0xff] %v385
      %387 = vrot.lane.b32.xlu0 %v299, 96
      %v388 = vpop.permute.xlu0 %387
      %389 = vrot.lane.b32.xlu0 %v295, 96
      %v390 = vpop.permute.xlu0 %389
      %391 = vrot.lane.b32.xlu0 %v300, 96
      %v392 = vpop.permute.xlu0 %391
      %vm393 = vcmask 785408
      %v394 = vsel %vm393, %v388, %v390
      %v395 = vsel %vm393, %v390, %v392
      %v398 = vsel %vm303, %v394, 0.0
      %v399 = vsel %vm304, %v395, 0.0
      %v400 = vpack.c.bf16 %v399, %v398
      %401 = vst [vmem:[#allocation2 + $0x30] sm:$0xff] %v400
      %402 = vrot.lane.b32.xlu0 %v309, 95
      %v403 = vpop.permute.xlu0 %402
      %404 = vrot.lane.b32.xlu0 %v310, 95
      %v405 = vpop.permute.xlu0 %404
      %v406 = vrot.slane %v403, 4
      %v407 = vrot.slane %v405, 4
      %v408 = vsel %vm319, %v406, %v407
      %vm409 = vcmask 777216
      %v410 = vsel %vm409, %v403, %v408
      %412 = vst [vmem:[#allocation2 + $0x38] sm:$0xff] %v410
      %413 = vrot.lane.b32.xlu0 %v299, 94
      %v414 = vpop.permute.xlu0 %413
      %415 = vrot.lane.b32.xlu0 %v295, 94
      %v416 = vpop.permute.xlu0 %415
      %417 = vrot.lane.b32.xlu0 %v300, 94
      %v418 = vpop.permute.xlu0 %417
      %vm419 = vcmask 769024
      %v420 = vsel %vm419, %v414, %v416
      %v421 = vsel %vm419, %v416, %v418
      %v424 = vsel %vm327, %v420, 0.0
      %v425 = vsel %vm328, %v421, 0.0
      %v426 = vpack.c.bf16 %v425, %v424
      %427 = vst [vmem:[#allocation2 + $0x40] sm:$0xff] %v426
      %v428 = vld [vmem:[%s3] sm:$0xf]
      %v429 = vld [vmem:[#allocation2] sm:$0xff]
      %v430 = vld [vmem:[#allocation2 + $0x8] sm:$0xff]
      %v431 = vld [vmem:[#allocation2 + $0x10] sm:$0xff]
      %v432 = vld [vmem:[#allocation2 + $0x18] sm:$0xff]
      %v433 = vld [vmem:[#allocation2 + $0x20] sm:$0xff]
      %v434 = vld [vmem:[#allocation2 + $0x28] sm:$0xff]
      %v435 = vld [vmem:[#allocation2 + $0x30] sm:$0xff]
      %v436 = vld [vmem:[#allocation2 + $0x38] sm:$0xff]
      %v437 = vld [vmem:[#allocation2 + $0x40] sm:$0xff]
      %v447 = vunpack.c.l.b16 %v429
      %v448 = vunpack.c.h.b16 %v429
      %v449 = vunpack.c.l.b16 %v430
      %v450 = vunpack.c.h.b16 %v430
      %v451 = vunpack.c.l.b16 %v431
      %v452 = vunpack.c.h.b16 %v431
      %v453 = vunpack.c.l.b16 %v432
      %v454 = vunpack.c.h.b16 %v432
      %v455 = vunpack.c.l.b16 %v433
      %v456 = vunpack.c.h.b16 %v433
      %v457 = vunpack.c.l.b16 %v434
      %v458 = vunpack.c.h.b16 %v434
      %v459 = vunpack.c.l.b16 %v435
      %v460 = vunpack.c.h.b16 %v435
      %v461 = vunpack.c.l.b16 %v436
      %v462 = vunpack.c.h.b16 %v436
      %v463 = vunpack.c.l.b16 %v437
      %v464 = vunpack.c.h.b16 %v437
      %v465 = vpack.c.b16 %v449, %v447
      %v466 = vpack.c.b16 %v450, %v448
      %v467 = vpack.c.b16 %v453, %v451
      %v468 = vpack.c.b16 %v454, %v452
      %v469 = vpack.c.b16 %v457, %v455
      %v470 = vpack.c.b16 %v458, %v456
      %v471 = vpack.c.b16 %v461, %v459
      %v472 = vpack.c.b16 %v462, %v460
      %v473 = vpack.c.b16 %v463, %v463
      %v474 = vpack.c.b16 %v464, %v464
      %vm483 = vcmask 588800
      %v485 = vsel %vm483, %v428, 0
      %vm487 = vcmask 1043456
      %v489 = vsel %vm487, %v473, 0
      %v492 = vsel %vm487, %v474, 0
      %494 = vmatpush.bf16.msra.mxu0 0
      %495 = vmatpush.bf16.msra.mxu0 0
      %496 = vmatpush.bf16.msra.mxu0 0
      %497 = vmatpush.bf16.msra.mxu0 %v489
      %498 = vmatpush.bf16.msra.mxu0 %v471
      %499 = vmatpush.bf16.msra.mxu0 %v469
      %500 = vmatpush.bf16.msra.mxu0 %v467
      %501 = vmatpush.bf16.msra.mxu0 %v465
      %502 = vmatmul.bf16.gmra.mxu0 %v485
      %v503 = vpop.f32.mrf.mxu0
      %v504 = vadd.f32 0.0, %v503
      %v505 = vpop.f32.mrf.mxu0
      %506 = vdwg.mxu0
      %507 = vmatpush.bf16.msra.mxu0 0
      %508 = vmatpush.bf16.msra.mxu0 0
      %509 = vmatpush.bf16.msra.mxu0 0
      %510 = vmatpush.bf16.msra.mxu0 %v492
      %511 = vmatpush.bf16.msra.mxu0 %v472
      %512 = vmatpush.bf16.msra.mxu0 %v470
      %513 = vmatpush.bf16.msra.mxu0 %v468
      %514 = vmatpush.bf16.msra.mxu0 %v466
      %515 = vmatmul.bf16.gmra.mxu0 %v485
      %v516 = vpop.f32.mrf.mxu0
      %v517 = vadd.f32 0.0, %v516
      %v518 = vpop.f32.mrf.mxu0
      %519 = vdwg.mxu0
      %v520 = vadd.f32 %v504, %v517
      %521 = vadd.xlane.f32.xlu0 %v520
      %v522 = vpop.xlane.xlu0 %521
      %v523 = vmul.f32 %v504, %v504
      %v524 = vmul.f32 %v517, %v517
      %v525 = vadd.f32 %v523, %v524
      %526 = vadd.xlane.f32.xlu0 %v525
      %v527 = vpop.xlane.xlu0 %526
      %vm528 = vcmask 7168
      %v529 = vsel %vm528, %v522, %v527
      %vm530 = vcmask 15360
      %531 = vst.msk [vmem:[%s235] sm:$0xff] %vm530, %v529
      %532 = vst [vmem:[%s231] sm:$0xff] %v504
      %533 = vst [vmem:[%s231 + $0x8] sm:$0xff] %v517
      %p534 = scmp.lt.s32.totalorder %s17, 1
      %s535 = scalar_select %p534, %s17, 1
      %s536 = smul.addr %s535, 2
      %s537 = smul.addr %s536, 8
      %s538 = scalar_lea.vmem %s4, %s537
      %p539 = scmp.lt.s32.totalorder %s17, 1
      %s540 = scalar_select %p539, %s17, 1
      %s541 = smul.addr %s540, 8
      %s542 = scalar_lea.vmem %s5, %s541
      // Predicated region
      $region37: #{double_conv_forward.4} parent=35 // pred_check
        %p543 = pneg %p124
      $region38: #{double_conv_forward.4} parent=35 // pred_check_branch
        %545 = sbr.rel (%p543) target = $region40
      $region39: #{double_conv_forward.4} parent=35 // pred_region
        _
      $region40: #{double_conv_forward.4} parent=35 // pred_fallthru
        _
      // Predicated region
      $region41: #{double_conv_forward.4} parent=35 // pred_check
        %p546 = pneg %p150
      $region42: #{double_conv_forward.4} parent=35 // pred_check_branch
        %548 = sbr.rel (%p546) target = $region44
      $region43: #{double_conv_forward.4} parent=35 // pred_region
        _
      $region44: #{double_conv_forward.4} parent=35 // pred_fallthru
        _
    $region36: #{double_conv_forward.4} parent=5 // pred_fallthru
      _
    %p549 = scmp.le.s32.totalorder 2, %s12
    // Predicated region
    $region45: #{double_conv_forward.4} parent=5 // pred_check
      %p550 = pneg %p549
    $region46: #{double_conv_forward.4} parent=5 // pred_check_branch
      %552 = sbr.rel (%p550) target = $region48
    $region47: #{double_conv_forward.4} parent=5 // pred_region
      %s553 = ssub.s32 %s12, 2
      // Predicated region
      $region49: #{double_conv_forward.4} parent=47 // pred_check
        %p554 = pneg %p130
      $region50: #{double_conv_forward.4} parent=47 // pred_check_branch
        %556 = sbr.rel (%p554) target = $region52
      $region51: #{double_conv_forward.4} parent=47 // pred_region
        %p557 = scmp.lt.s32.totalorder %s18, 1
        %s558 = scalar_select %p557, %s18, 1
        %s559 = smul.addr %s558, 2
        %s560 = smul.addr %s559, 8
        %s561 = scalar_lea.vmem %s4, %s560
      $region52: #{double_conv_forward.4} parent=47 // pred_fallthru
        _
      // Predicated region
      $region53: #{double_conv_forward.4} parent=47 // pred_check
        %p562 = pneg %p156
      $region54: #{double_conv_forward.4} parent=47 // pred_check_branch
        %564 = sbr.rel (%p562) target = $region56
      $region55: #{double_conv_forward.4} parent=47 // pred_region
        %p565 = scmp.lt.s32.totalorder %s18, 1
        %s566 = scalar_select %p565, %s18, 1
        %s567 = smul.addr %s566, 8
        %s568 = scalar_lea.vmem %s5, %s567
      $region56: #{double_conv_forward.4} parent=47 // pred_fallthru
        _
    $region48: #{double_conv_forward.4} parent=5 // pred_fallthru
      _
  $region6: #{double_conv_forward.4} parent=0 // loop_footer
    %s16 = sadd.s32 1, %s12
  $region7: #{double_conv_forward.4} parent=0 // loop_footer_branch
    %11 = sbr.rel target = $region3
  $region8: #{double_conv_forward.4} parent=0 // loop_exit
    _

</llo_original>
